<compile_context>
chip_gen: v7x
topology: tpu7x:2x2x1
jax: 0.10.0
libtpu: 0.0.40
codegen_flags: <defaults>
</compile_context>

<pallas_src>
import functools

import jax
import jax.numpy as jnp
from jax.experimental import pallas as pl
from jax.experimental.pallas import tpu as pltpu


def _round_up(v, m):
    return (v + m - 1) // m * m


def _dir_sage_kernel(a_in_ref, a_out_ref, x_rows_ref, x_cols_ref, w_ref, b_ref,
                     out_ref, acc_in_ref, acc_out_ref, *, deg_col, f_seg):
    k = pl.program_id(1)

    @pl.when(k == 0)
    def _init():
        acc_in_ref[...] = jnp.zeros_like(acc_in_ref)
        acc_out_ref[...] = jnp.zeros_like(acc_out_ref)

    # --- k-reduction: accumulate unnormalized neighbor sums -------------------
    # int8 {0,1} -> bf16 (exact), then native bf16 x bf16 MXU with f32 accumulate.
    xk = x_cols_ref[...]                                    # [TK, F_pad] bf16 (col deg_col == 1)
    a_in = a_in_ref[...].astype(jnp.bfloat16)               # [TM, TK]
    a_out = a_out_ref[...].astype(jnp.bfloat16)             # [TM, TK]
    acc_in_ref[...] += jnp.dot(a_in, xk, preferred_element_type=jnp.float32)
    acc_out_ref[...] += jnp.dot(a_out, xk, preferred_element_type=jnp.float32)

    @pl.when(k == pl.num_programs(1) - 1)
    def _finalize():
        # Degrees fell out of the same matmul via the appended ones column.
        inv_in = 1.0 / jnp.maximum(acc_in_ref[:, deg_col:deg_col + 1], 1.0)
        inv_out = 1.0 / jnp.maximum(acc_out_ref[:, deg_col:deg_col + 1], 1.0)
        mean_in = acc_in_ref[...] * inv_in                  # [TM, F_pad] f32
        mean_out = acc_out_ref[...] * inv_out
        # Three statically-sliced projections against the stacked, alpha-folded
        # weight (padding rows of W are zero, so the ones/degree column and the
        # feature padding contribute nothing).  Epilogue kept in f32 (tiny).
        out = jnp.dot(x_rows_ref[...], w_ref[0:f_seg, :],
                      preferred_element_type=jnp.float32)
        out = out + jnp.dot(mean_in, w_ref[f_seg:2 * f_seg, :],
                            preferred_element_type=jnp.float32)
        out = out + jnp.dot(mean_out, w_ref[2 * f_seg:3 * f_seg, :],
                            preferred_element_type=jnp.float32)
        out_ref[...] = out + b_ref[...]


def _choose_tiles(n):
    """Row tile TM, neighbor tile TK, padded node count (TM | TK | n_pad)."""
    n128 = _round_up(max(n, 1), 128)
    if n128 >= 2048:
        tm, tk = 512, 1024                       # g_m >= 2 (v7x megacore), big k tile
        n_pad = _round_up(n128, 1024)
    elif n128 >= 512 and n128 % 256 == 0:
        n_pad, tk, tm = n128, n128, n128 // 2    # still 2 row tiles for v7x
    else:
        n_pad, tk, tm = n128, n128, n128         # tiny graph: single tile
    return tm, tk, n_pad


def dir_sage_conv(x, edge_index, w_self, b_self, w_s2d, b_s2d, w_d2s, b_d2s, alpha):
    """x: [N, F_in] float32; edge_index: [2, E] int32 (row 0 = src, row 1 = dst)."""
    n, f_in = x.shape
    f_out = w_self.shape[0]
    alpha = float(alpha)

    # --- padded / tiled shapes -------------------------------------------------
    # Reserve one extra feature column (index f_in) to carry the degree counter.
    f_in_pad = _round_up(f_in + 1, 128)
    f_out_pad = _round_up(f_out, 128)
    tm, tk, n_pad = _choose_tiles(n)
    g_m, g_k = n_pad // tm, n_pad // tk

    # --- wrapper-side preprocessing (all in the compact dtype) -----------------
    src = edge_index[0].astype(jnp.int32)
    dst = edge_index[1].astype(jnp.int32)
    # A_in[i, j]  = 1 iff edge (j -> i);  A_out[i, j] = 1 iff edge (i -> j).
    a_in = jnp.zeros((n_pad, n_pad), jnp.int8).at[dst, src].set(1)
    a_out = jnp.zeros((n_pad, n_pad), jnp.int8).at[src, dst].set(1)

    x_rows = jnp.zeros((n_pad, f_in_pad), jnp.float32).at[:n, :f_in].set(x)
    # bf16 copy for the aggregation matmuls, with a ones column so the same
    # matmul also produces the (deduplicated) degree in column f_in.
    x_cols = x_rows.at[:, f_in].set(1.0).astype(jnp.bfloat16)

    # Stacked, alpha-folded weights ([out,in] -> [in,out]) and single folded bias.
    w_cat = jnp.zeros((3 * f_in_pad, f_out_pad), jnp.float32)
    w_cat = w_cat.at[0:f_in, :f_out].set(w_self.T)
    w_cat = w_cat.at[f_in_pad:f_in_pad + f_in, :f_out].set((1.0 - alpha) * w_s2d.T)
    w_cat = w_cat.at[2 * f_in_pad:2 * f_in_pad + f_in, :f_out].set(alpha * w_d2s.T)
    b_cat = jnp.zeros((1, f_out_pad), jnp.float32).at[0, :f_out].set(
        b_self + (1.0 - alpha) * b_s2d + alpha * b_d2s)

    kernel = functools.partial(_dir_sage_kernel, deg_col=f_in, f_seg=f_in_pad)

    out_pad = pl.pallas_call(
        kernel,
        out_shape=jax.ShapeDtypeStruct((n_pad, f_out_pad), jnp.float32),
        grid_spec=pltpu.PrefetchScalarGridSpec(
            num_scalar_prefetch=0,
            grid=(g_m, g_k),
            in_specs=[
                pl.BlockSpec((tm, tk), lambda i, k: (i, k)),              # A_in  int8
                pl.BlockSpec((tm, tk), lambda i, k: (i, k)),              # A_out int8
                pl.BlockSpec((tm, f_in_pad), lambda i, k: (i, 0)),        # x rows (self term, f32)
                pl.BlockSpec((tk, f_in_pad), lambda i, k: (k, 0)),        # x cols (+ones, bf16)
                pl.BlockSpec((3 * f_in_pad, f_out_pad), lambda i, k: (0, 0)),  # stacked W
                pl.BlockSpec((1, f_out_pad), lambda i, k: (0, 0)),        # folded bias
            ],
            out_specs=pl.BlockSpec((tm, f_out_pad), lambda i, k: (i, 0)),
            scratch_shapes=[
                pltpu.VMEM((tm, f_in_pad), jnp.float32),                  # acc_in
                pltpu.VMEM((tm, f_in_pad), jnp.float32),                  # acc_out
            ],
        ),
        compiler_params=pltpu.CompilerParams(
            dimension_semantics=("parallel", "arbitrary"),
            vmem_limit_bytes=32 * 1024 * 1024,   # fits default tiles on v5e/v6e/v7x
        ),
    )(a_in, a_out, x_rows, x_cols, w_cat, b_cat)

    return out_pad[:n, :f_out]


def _reference(x, edge_index, w_self, b_self, w_s2d, b_s2d, w_d2s, b_d2s, alpha):
    n = x.shape[0]
    src, dst = edge_index[0], edge_index[1]
    adj = jnp.zeros((n, n), jnp.float32).at[dst, src].set(1.0)
    agg_in = (adj @ x) / jnp.maximum(adj.sum(1, keepdims=True), 1.0)
    adj_t = adj.T
    agg_out = (adj_t @ x) / jnp.maximum(adj_t.sum(1, keepdims=True), 1.0)
    return (x @ w_self.T + b_self
            + (1.0 - alpha) * (agg_in @ w_s2d.T + b_s2d)
            + alpha * (agg_out @ w_d2s.T + b_d2s))


if __name__ == "__main__":
    key = jax.random.PRNGKey(0)
    N, F_IN, F_OUT, E = 64, 32, 32, 256
    ALPHA = 0.3

    ks = jax.random.split(key, 9)
    x = jax.random.normal(ks[0], (N, F_IN), jnp.float32)
    edge_index = jnp.stack([
        jax.random.randint(ks[1], (E,), 0, N),
        jax.random.randint(ks[2], (E,), 0, N),
    ]).astype(jnp.int32)

    def lin_init(kw, kb, fan_in, fan_out):
        bound = 1.0 / (fan_in ** 0.5)
        w = jax.random.uniform(kw, (fan_out, fan_in), jnp.float32, -bound, bound)
        b = jax.random.uniform(kb, (fan_out,), jnp.float32, -bound, bound)
        return w, b

    w_self, b_self = lin_init(ks[3], ks[4], F_IN, F_OUT)
    w_s2d, b_s2d = lin_init(ks[5], ks[6], F_IN, F_OUT)
    w_d2s, b_d2s = lin_init(ks[7], ks[8], F_IN, F_OUT)

    out = dir_sage_conv(x, edge_index, w_self, b_self, w_s2d, b_s2d,
                        w_d2s, b_d2s, ALPHA)
    out = jax.block_until_ready(out)

    ref = _reference(x, edge_index, w_self, b_self, w_s2d, b_s2d,
                     w_d2s, b_d2s, ALPHA)
    assert out.shape == (N, F_OUT)
    # bf16 aggregation path: only the one-time bf16 cast of x is lossy
    # (~2e-3 relative); accumulation and epilogue are f32.
    assert jnp.allclose(out, ref, atol=3e-2, rtol=3e-2), "mismatch vs reference"
    print("KERNEL_OK")
</pallas_src>

<mosaic_0001>
module attributes {stable_mosaic.version = 11 : i64} {
  func.func @_dir_sage_kernel(%arg0: i32, %arg1: i32, %arg2: memref<128x128xi8, #tpu.memory_space<vmem>>, %arg3: memref<128x128xi8, #tpu.memory_space<vmem>>, %arg4: memref<128x128xf32, #tpu.memory_space<vmem>>, %arg5: memref<128x128xbf16, #tpu.memory_space<vmem>>, %arg6: memref<384x128xf32, #tpu.memory_space<vmem>>, %arg7: memref<1x128xf32, #tpu.memory_space<vmem>>, %arg8: memref<128x128xf32, #tpu.memory_space<vmem>>, %arg9: memref<128x128xf32, #tpu.memory_space<vmem>>, %arg10: memref<128x128xf32, #tpu.memory_space<vmem>>) attributes {dimension_semantics = [#tpu.dimension_semantics<parallel>, #tpu.dimension_semantics<arbitrary>], iteration_bounds = array<i64: 1, 1>, scalar_prefetch = 0 : i64, scratch_operands = 2 : i64, tpu.core_type = #tpu.core_type<tc>, window_params = [{transform_indices = @transform_0, window_bounds = array<i64: 128, 128>}, {transform_indices = @transform_1, window_bounds = array<i64: 128, 128>}, {transform_indices = @transform_2, window_bounds = array<i64: 128, 128>}, {transform_indices = @transform_3, window_bounds = array<i64: 128, 128>}, {pipeline_mode = #tpu.pipeline_mode<synchronous>, transform_indices = @transform_4, window_bounds = array<i64: 384, 128>}, {pipeline_mode = #tpu.pipeline_mode<synchronous>, transform_indices = @transform_5, window_bounds = array<i64: 1, 128>}, {transform_indices = @transform_6, window_bounds = array<i64: 128, 128>}]} {
    %c0_i32 = arith.constant 0 : i32
    %0 = arith.cmpi eq, %arg1, %c0_i32 : i32
    %1 = arith.extui %0 : i1 to i32
    %c0_i32_0 = arith.constant 0 : i32
    %2 = arith.cmpi ne, %1, %c0_i32_0 : i32
    scf.if %2 {
      %cst_17 = arith.constant 0.000000e+00 : f32
      %19 = vector.broadcast %cst_17 : f32 to vector<128x128xf32>
      %c0_18 = arith.constant 0 : index
      %c0_19 = arith.constant 0 : index
      %20 = vector.load %arg9[%c0_18, %c0_19] : memref<128x128xf32, #tpu.memory_space<vmem>>, vector<128x128xf32>
      tpu.vector_store %arg9[%c0_18, %c0_19], %19 {strides = array<i32>} : memref<128x128xf32, #tpu.memory_space<vmem>>, vector<128x128xf32>,
      %cst_20 = arith.constant 0.000000e+00 : f32
      %21 = vector.broadcast %cst_20 : f32 to vector<128x128xf32>
      %c0_21 = arith.constant 0 : index
      %c0_22 = arith.constant 0 : index
      %22 = vector.load %arg10[%c0_21, %c0_22] : memref<128x128xf32, #tpu.memory_space<vmem>>, vector<128x128xf32>
      tpu.vector_store %arg10[%c0_21, %c0_22], %21 {strides = array<i32>} : memref<128x128xf32, #tpu.memory_space<vmem>>, vector<128x128xf32>,
    } else {
    }
    %c0 = arith.constant 0 : index
    %c0_1 = arith.constant 0 : index
    %3 = vector.load %arg5[%c0, %c0_1] : memref<128x128xbf16, #tpu.memory_space<vmem>>, vector<128x128xbf16>
    %c0_2 = arith.constant 0 : index
    %c0_3 = arith.constant 0 : index
    %4 = vector.load %arg2[%c0_2, %c0_3] : memref<128x128xi8, #tpu.memory_space<vmem>>, vector<128x128xi8>
    %5 = arith.sitofp %4 : vector<128x128xi8> to vector<128x128xbf16>
    %c0_4 = arith.constant 0 : index
    %c0_5 = arith.constant 0 : index
    %6 = vector.load %arg3[%c0_4, %c0_5] : memref<128x128xi8, #tpu.memory_space<vmem>>, vector<128x128xi8>
    %7 = arith.sitofp %6 : vector<128x128xi8> to vector<128x128xbf16>
    %c0_6 = arith.constant 0 : index
    %c0_7 = arith.constant 0 : index
    %8 = vector.load %arg9[%c0_6, %c0_7] : memref<128x128xf32, #tpu.memory_space<vmem>>, vector<128x128xf32>
    %cst = arith.constant dense<0.000000e+00> : vector<128x128xf32>
    %9 = tpu.matmul %5, %3, %cst {dimension_numbers = #tpu.dot_dimension_numbers<[1], [0], [0], [1], [0, 0, 1, 1], [], []>} : vector<128x128xbf16>, vector<128x128xbf16>, vector<128x128xf32> -> vector<128x128xf32>
    %10 = arith.addf %8, %9 : vector<128x128xf32>
    %c0_8 = arith.constant 0 : index
    %c0_9 = arith.constant 0 : index
    %11 = vector.load %arg9[%c0_8, %c0_9] : memref<128x128xf32, #tpu.memory_space<vmem>>, vector<128x128xf32>
    tpu.vector_store %arg9[%c0_8, %c0_9], %10 {strides = array<i32>} : memref<128x128xf32, #tpu.memory_space<vmem>>, vector<128x128xf32>,
    %c0_10 = arith.constant 0 : index
    %c0_11 = arith.constant 0 : index
    %12 = vector.load %arg10[%c0_10, %c0_11] : memref<128x128xf32, #tpu.memory_space<vmem>>, vector<128x128xf32>
    %cst_12 = arith.constant dense<0.000000e+00> : vector<128x128xf32>
    %13 = tpu.matmul %7, %3, %cst_12 {dimension_numbers = #tpu.dot_dimension_numbers<[1], [0], [0], [1], [0, 0, 1, 1], [], []>} : vector<128x128xbf16>, vector<128x128xbf16>, vector<128x128xf32> -> vector<128x128xf32>
    %14 = arith.addf %12, %13 : vector<128x128xf32>
    %c0_13 = arith.constant 0 : index
    %c0_14 = arith.constant 0 : index
    %15 = vector.load %arg10[%c0_13, %c0_14] : memref<128x128xf32, #tpu.memory_space<vmem>>, vector<128x128xf32>
    tpu.vector_store %arg10[%c0_13, %c0_14], %14 {strides = array<i32>} : memref<128x128xf32, #tpu.memory_space<vmem>>, vector<128x128xf32>,
    %c0_i32_15 = arith.constant 0 : i32
    %16 = arith.cmpi eq, %arg1, %c0_i32_15 : i32
    %17 = arith.extui %16 : i1 to i32
    %c0_i32_16 = arith.constant 0 : i32
    %18 = arith.cmpi ne, %17, %c0_i32_16 : i32
    scf.if %18 {
      %c0_17 = arith.constant 0 : index
      %c32 = arith.constant 32 : index
      %19 = vector.load %arg9[%c0_17, %c32] : memref<128x128xf32, #tpu.memory_space<vmem>>, vector<128x1xf32>
      %cst_18 = arith.constant 1.000000e+00 : f32
      %20 = vector.broadcast %cst_18 : f32 to vector<128x1xf32>
      %21 = arith.maximumf %19, %20 : vector<128x1xf32>
      %cst_19 = arith.constant 1.000000e+00 : f32
      %22 = vector.broadcast %cst_19 : f32 to vector<128x1xf32>
      %23 = arith.divf %22, %21 : vector<128x1xf32>
      %c0_20 = arith.constant 0 : index
      %c32_21 = arith.constant 32 : index
      %24 = vector.load %arg10[%c0_20, %c32_21] : memref<128x128xf32, #tpu.memory_space<vmem>>, vector<128x1xf32>
      %cst_22 = arith.constant 1.000000e+00 : f32
      %25 = vector.broadcast %cst_22 : f32 to vector<128x1xf32>
      %26 = arith.maximumf %24, %25 : vector<128x1xf32>
      %cst_23 = arith.constant 1.000000e+00 : f32
      %27 = vector.broadcast %cst_23 : f32 to vector<128x1xf32>
      %28 = arith.divf %27, %26 : vector<128x1xf32>
      %c0_24 = arith.constant 0 : index
      %c0_25 = arith.constant 0 : index
      %29 = vector.load %arg9[%c0_24, %c0_25] : memref<128x128xf32, #tpu.memory_space<vmem>>, vector<128x128xf32>
      %30 = vector.broadcast %23 : vector<128x1xf32> to vector<128x128xf32>
      %31 = arith.mulf %29, %30 : vector<128x128xf32>
      %c0_26 = arith.constant 0 : index
      %c0_27 = arith.constant 0 : index
      %32 = vector.load %arg10[%c0_26, %c0_27] : memref<128x128xf32, #tpu.memory_space<vmem>>, vector<128x128xf32>
      %33 = vector.broadcast %28 : vector<128x1xf32> to vector<128x128xf32>
      %34 = arith.mulf %32, %33 : vector<128x128xf32>
      %c0_28 = arith.constant 0 : index
      %c0_29 = arith.constant 0 : index
      %35 = vector.load %arg4[%c0_28, %c0_29] : memref<128x128xf32, #tpu.memory_space<vmem>>, vector<128x128xf32>
      %c0_30 = arith.constant 0 : index
      %c0_31 = arith.constant 0 : index
      %36 = vector.load %arg6[%c0_30, %c0_31] : memref<384x128xf32, #tpu.memory_space<vmem>>, vector<128x128xf32>
      %cst_32 = arith.constant dense<0.000000e+00> : vector<128x128xf32>
      %37 = tpu.matmul %35, %36, %cst_32 {dimension_numbers = #tpu.dot_dimension_numbers<[1], [0], [0], [1], [0, 0, 1, 1], [], []>} : vector<128x128xf32>, vector<128x128xf32>, vector<128x128xf32> -> vector<128x128xf32>
      %c128 = arith.constant 128 : index
      %c0_33 = arith.constant 0 : index
      %38 = vector.load %arg6[%c128, %c0_33] : memref<384x128xf32, #tpu.memory_space<vmem>>, vector<128x128xf32>
      %cst_34 = arith.constant dense<0.000000e+00> : vector<128x128xf32>
      %39 = tpu.matmul %31, %38, %cst_34 {dimension_numbers = #tpu.dot_dimension_numbers<[1], [0], [0], [1], [0, 0, 1, 1], [], []>} : vector<128x128xf32>, vector<128x128xf32>, vector<128x128xf32> -> vector<128x128xf32>
      %40 = arith.addf %37, %39 : vector<128x128xf32>
      %c256 = arith.constant 256 : index
      %c0_35 = arith.constant 0 : index
      %41 = vector.load %arg6[%c256, %c0_35] : memref<384x128xf32, #tpu.memory_space<vmem>>, vector<128x128xf32>
      %cst_36 = arith.constant dense<0.000000e+00> : vector<128x128xf32>
      %42 = tpu.matmul %34, %41, %cst_36 {dimension_numbers = #tpu.dot_dimension_numbers<[1], [0], [0], [1], [0, 0, 1, 1], [], []>} : vector<128x128xf32>, vector<128x128xf32>, vector<128x128xf32> -> vector<128x128xf32>
      %43 = arith.addf %40, %42 : vector<128x128xf32>
      %c0_37 = arith.constant 0 : index
      %c0_38 = arith.constant 0 : index
      %44 = vector.load %arg7[%c0_37, %c0_38] : memref<1x128xf32, #tpu.memory_space<vmem>>, vector<1x128xf32>
      %45 = vector.broadcast %44 : vector<1x128xf32> to vector<128x128xf32>
      %46 = arith.addf %43, %45 : vector<128x128xf32>
      %c0_39 = arith.constant 0 : index
      %c0_40 = arith.constant 0 : index
      %47 = vector.load %arg8[%c0_39, %c0_40] : memref<128x128xf32, #tpu.memory_space<vmem>>, vector<128x128xf32>
      tpu.vector_store %arg8[%c0_39, %c0_40], %46 {strides = array<i32>} : memref<128x128xf32, #tpu.memory_space<vmem>>, vector<128x128xf32>,
    } else {
    }
    return
  }
  func.func @transform_0(%arg0: i32, %arg1: i32) -> (i32, i32) {
    %c0_i32 = arith.constant 0 : i32
    return %arg0, %arg1 : i32, i32
  }
  func.func @transform_1(%arg0: i32, %arg1: i32) -> (i32, i32) {
    %c0_i32 = arith.constant 0 : i32
    return %arg0, %arg1 : i32, i32
  }
  func.func @transform_2(%arg0: i32, %arg1: i32) -> (i32, i32) {
    %c0_i32 = arith.constant 0 : i32
    %c0_i32_0 = arith.constant 0 : i32
    return %arg0, %c0_i32 : i32, i32
  }
  func.func @transform_3(%arg0: i32, %arg1: i32) -> (i32, i32) {
    %c0_i32 = arith.constant 0 : i32
    %c0_i32_0 = arith.constant 0 : i32
    return %arg1, %c0_i32 : i32, i32
  }
  func.func @transform_4(%arg0: i32, %arg1: i32) -> (i32, i32) {
    %c0_i32 = arith.constant 0 : i32
    %c0_i32_0 = arith.constant 0 : i32
    %c0_i32_1 = arith.constant 0 : i32
    return %c0_i32, %c0_i32_0 : i32, i32
  }
  func.func @transform_5(%arg0: i32, %arg1: i32) -> (i32, i32) {
    %c0_i32 = arith.constant 0 : i32
    %c0_i32_0 = arith.constant 0 : i32
    %c0_i32_1 = arith.constant 0 : i32
    return %c0_i32, %c0_i32_0 : i32, i32
  }
  func.func @transform_6(%arg0: i32, %arg1: i32) -> (i32, i32) {
    %c0_i32 = arith.constant 0 : i32
    %c0_i32_0 = arith.constant 0 : i32
    return %arg0, %c0_i32 : i32, i32
  }
}

</mosaic_0001>

<llo_original>
// kernel: tpu_custom_call.1
$region0: #{tpu_custom_call.1}
  #allocation0 [shape = 'u32[]', space=smem, size = 0x4, offset = 0x4, fixed_abs, tag = 'smem constant byte address 0x4 - core index']
  #allocation1 [shape = 'u32[144,128]{1,0:T(1,128)}', space=vmem, size = 0x12000, scoped, tag = 'internal scratch']
  #allocation2 [shape = 'f32[128,128]{1,0:T(8,128)}', space=vmem, size = 0x10000, scoped, tag = 'scratch operand']
  #allocation3 [shape = 'f32[128,128]{1,0:T(8,128)}', space=vmem, size = 0x10000, scoped, tag = 'scratch operand']
  %s0 = inlined_call_operand.hbm [shape: s8[128,128], index: 0, kind: input, shape index: {}]
  %s1 = inlined_call_operand.hbm [shape: s8[128,128], index: 1, kind: input, shape index: {}]
  %s2 = inlined_call_operand.hbm [shape: f32[128,128], index: 2, kind: input, shape index: {}]
  %s3 = inlined_call_operand.hbm [shape: bf16[128,128], index: 3, kind: input, shape index: {}]
  %s4 = inlined_call_operand.hbm [shape: f32[384,128], index: 4, kind: input, shape index: {}]
  %s5 = inlined_call_operand.vmem [shape: f32[1,128], index: 5, kind: input, shape index: {}]
  %s6 = inlined_call_operand.hbm [shape: f32[128,128], index: 6, kind: output, shape index: {}]
  %s7 = sld [smem:[#allocation0]]
  $region62: #{tpu_custom_call.1} parent=0
    _
  %s9 = ssub.s32 1, %s7
  %s10 = scalar_select 0, %s9, %s7
  $region1: #{tpu_custom_call.1} parent=0
    #allocation4 [shape = 'u8[16384]{0}', space=vmem, size = 0x4000, scoped, tag = 'input window, operand 0, single buffered']
    #allocation5 [shape = 's32[1]{0}', space=sflag, size = 0x4, scoped, tag = 'scoped memory for tpu_custom_call.1']
    #allocation6 [shape = 's32[1]{0}', space=sflag, size = 0x4, scoped, tag = 'scoped memory for tpu_custom_call.1']
    #allocation7 [shape = 'u8[16384]{0}', space=vmem, size = 0x4000, scoped, tag = 'input window, operand 1, single buffered']
    #allocation8 [shape = 's32[1]{0}', space=sflag, size = 0x4, scoped, tag = 'scoped memory for tpu_custom_call.1']
    #allocation9 [shape = 'u8[65536]{0}', space=vmem, size = 0x10000, scoped, tag = 'input window, operand 2, single buffered']
    #allocation10 [shape = 'u8[32768]{0}', space=vmem, size = 0x8000, scoped, tag = 'input window, operand 3, single buffered']
    #allocation11 [shape = 's32[1]{0}', space=sflag, size = 0x4, scoped, tag = 'scoped memory for tpu_custom_call.1']
    #allocation12 [shape = 'u8[196608]{0}', space=vmem, size = 0x30000, scoped, tag = 'input window, operand 4, single buffered']
    #allocation13 [shape = 'u8[65536]{0}', space=vmem, size = 0x10000, scoped, tag = 'output window, operand 0, single buffered']
    %11 = vsyncpa [#allocation5], 0
    %12 = vsyncpa [#allocation8], 0
    %13 = vsyncpa [#allocation11], 0
    %14 = vsyncpa [#allocation6], 0
    // Predicated region
    $region2: #{tpu_custom_call.1} parent=1 // pred_check
      _
    $region3: #{tpu_custom_call.1} parent=1 // pred_check_branch
      %16 = sbr.rel (0) target = $region5
    $region4: #{tpu_custom_call.1} parent=1 // pred_region
      %s18 = ssub.s32 512, 512
      %19 = vsyncadd [#allocation5], %s18
      %s20 = sshll.u32 [#allocation4], 4
      %s21 = int_to_ptr.vmem [resolvable:$true] %s20
      %26 = dma.hbm_to_vmem [thread:$0]  %s0, 512, %s21, [#allocation5], 128, 128, 8
    $region5: #{tpu_custom_call.1} parent=1 // pred_fallthru
      _
    // Predicated region
    $region6: #{tpu_custom_call.1} parent=1 // pred_check
      _
    $region7: #{tpu_custom_call.1} parent=1 // pred_check_branch
      %28 = sbr.rel (0) target = $region9
    $region8: #{tpu_custom_call.1} parent=1 // pred_region
      %s30 = ssub.s32 512, 512
      %31 = vsyncadd [#allocation8], %s30
      %s32 = sshll.u32 [#allocation7], 4
      %s33 = int_to_ptr.vmem [resolvable:$true] %s32
      %38 = dma.hbm_to_vmem [thread:$0]  %s1, 512, %s33, [#allocation8], 128, 128, 8
    $region9: #{tpu_custom_call.1} parent=1 // pred_fallthru
      _
    // Predicated region
    $region10: #{tpu_custom_call.1} parent=1 // pred_check
      _
    $region11: #{tpu_custom_call.1} parent=1 // pred_check_branch
      %40 = sbr.rel (0) target = $region13
    $region12: #{tpu_custom_call.1} parent=1 // pred_region
      %s42 = ssub.s32 2048, 2048
      %43 = vsyncadd [#allocation8], %s42
      %s44 = sshll.u32 [#allocation9], 4
      %s45 = int_to_ptr.vmem [resolvable:$true] %s44
      %50 = dma.hbm_to_vmem [thread:$0]  %s2, 2048, %s45, [#allocation8], 128, 128, 8
    $region13: #{tpu_custom_call.1} parent=1 // pred_fallthru
      _
    // Predicated region
    $region14: #{tpu_custom_call.1} parent=1 // pred_check
      _
    $region15: #{tpu_custom_call.1} parent=1 // pred_check_branch
      %52 = sbr.rel (0) target = $region17
    $region16: #{tpu_custom_call.1} parent=1 // pred_region
      %s54 = ssub.s32 1024, 1024
      %55 = vsyncadd [#allocation11], %s54
      %s56 = sshll.u32 [#allocation10], 4
      %s57 = int_to_ptr.vmem [resolvable:$true] %s56
      %62 = dma.hbm_to_vmem [thread:$0]  %s3, 1024, %s57, [#allocation11], 64, 64, 4
    $region17: #{tpu_custom_call.1} parent=1 // pred_fallthru
      _
    // Predicated region
    $region18: #{tpu_custom_call.1} parent=1 // pred_check
      _
    $region19: #{tpu_custom_call.1} parent=1 // pred_check_branch
      %64 = sbr.rel (0) target = $region21
    $region20: #{tpu_custom_call.1} parent=1 // pred_region
      %s66 = ssub.s32 6144, 6144
      %67 = vsyncadd [#allocation11], %s66
      %s68 = sshll.u32 [#allocation12], 4
      %s69 = int_to_ptr.vmem [resolvable:$true] %s68
      %74 = dma.hbm_to_vmem [thread:$0]  %s4, 6144, %s69, [#allocation11], 128, 128, 8
    $region21: #{tpu_custom_call.1} parent=1 // pred_fallthru
      _
    // Predicated region
    $region22: #{tpu_custom_call.1} parent=1 // pred_check
      _
    $region23: #{tpu_custom_call.1} parent=1 // pred_check_branch
      %76 = sbr.rel (0) target = $region25
    $region24: #{tpu_custom_call.1} parent=1 // pred_region
      _
    $region25: #{tpu_custom_call.1} parent=1 // pred_fallthru
      _
    // Predicated region
    $region26: #{tpu_custom_call.1} parent=1 // pred_check
      _
    $region27: #{tpu_custom_call.1} parent=1 // pred_check_branch
      %78 = sbr.rel (0) target = $region29
    $region28: #{tpu_custom_call.1} parent=1 // pred_region
      %79 = dma.done [#allocation5], 512
    $region29: #{tpu_custom_call.1} parent=1 // pred_fallthru
      _
    // Predicated region
    $region30: #{tpu_custom_call.1} parent=1 // pred_check
      _
    $region31: #{tpu_custom_call.1} parent=1 // pred_check_branch
      %81 = sbr.rel (0) target = $region33
    $region32: #{tpu_custom_call.1} parent=1 // pred_region
      %82 = dma.done [#allocation8], 512
    $region33: #{tpu_custom_call.1} parent=1 // pred_fallthru
      _
    // Predicated region
    $region34: #{tpu_custom_call.1} parent=1 // pred_check
      _
    $region35: #{tpu_custom_call.1} parent=1 // pred_check_branch
      %84 = sbr.rel (0) target = $region37
    $region36: #{tpu_custom_call.1} parent=1 // pred_region
      %85 = dma.done [#allocation8], 2048
    $region37: #{tpu_custom_call.1} parent=1 // pred_fallthru
      _
    // Predicated region
    $region38: #{tpu_custom_call.1} parent=1 // pred_check
      _
    $region39: #{tpu_custom_call.1} parent=1 // pred_check_branch
      %87 = sbr.rel (0) target = $region41
    $region40: #{tpu_custom_call.1} parent=1 // pred_region
      %88 = dma.done [#allocation11], 1024
    $region41: #{tpu_custom_call.1} parent=1 // pred_fallthru
      _
    // Predicated region
    $region42: #{tpu_custom_call.1} parent=1 // pred_check
      _
    $region43: #{tpu_custom_call.1} parent=1 // pred_check_branch
      %90 = sbr.rel (0) target = $region45
    $region44: #{tpu_custom_call.1} parent=1 // pred_region
      %91 = dma.done [#allocation11], 6144
    $region45: #{tpu_custom_call.1} parent=1 // pred_fallthru
      _
    %p93 = scmp.eq.s32.totalorder 0, 0
    // Predicated region
    $region46: #{tpu_custom_call.1} parent=1 // pred_check
      %p94 = pneg %p93
    $region47: #{tpu_custom_call.1} parent=1 // pred_check_branch
      %96 = sbr.rel (%p94) target = $region49
    $region48: #{tpu_custom_call.1} parent=1 // pred_region
      %97 = vst [vmem:[#allocation2] sm:$0xff] 0.0
      %98 = vst [vmem:[#allocation2 + $0x8] sm:$0xff] 0.0
      %99 = vst [vmem:[#allocation2 + $0x10] sm:$0xff] 0.0
      %100 = vst [vmem:[#allocation2 + $0x18] sm:$0xff] 0.0
      %101 = vst [vmem:[#allocation2 + $0x20] sm:$0xff] 0.0
      %102 = vst [vmem:[#allocation2 + $0x28] sm:$0xff] 0.0
      %103 = vst [vmem:[#allocation2 + $0x30] sm:$0xff] 0.0
      %104 = vst [vmem:[#allocation2 + $0x38] sm:$0xff] 0.0
      %105 = vst [vmem:[#allocation2 + $0x40] sm:$0xff] 0.0
      %106 = vst [vmem:[#allocation2 + $0x48] sm:$0xff] 0.0
      %107 = vst [vmem:[#allocation2 + $0x50] sm:$0xff] 0.0
      %108 = vst [vmem:[#allocation2 + $0x58] sm:$0xff] 0.0
      %109 = vst [vmem:[#allocation2 + $0x60] sm:$0xff] 0.0
      %110 = vst [vmem:[#allocation2 + $0x68] sm:$0xff] 0.0
      %111 = vst [vmem:[#allocation2 + $0x70] sm:$0xff] 0.0
      %112 = vst [vmem:[#allocation2 + $0x78] sm:$0xff] 0.0
      %113 = vst [vmem:[#allocation3] sm:$0xff] 0.0
      %114 = vst [vmem:[#allocation3 + $0x8] sm:$0xff] 0.0
      %115 = vst [vmem:[#allocation3 + $0x10] sm:$0xff] 0.0
      %116 = vst [vmem:[#allocation3 + $0x18] sm:$0xff] 0.0
      %117 = vst [vmem:[#allocation3 + $0x20] sm:$0xff] 0.0
      %118 = vst [vmem:[#allocation3 + $0x28] sm:$0xff] 0.0
      %119 = vst [vmem:[#allocation3 + $0x30] sm:$0xff] 0.0
      %120 = vst [vmem:[#allocation3 + $0x38] sm:$0xff] 0.0
      %121 = vst [vmem:[#allocation3 + $0x40] sm:$0xff] 0.0
      %122 = vst [vmem:[#allocation3 + $0x48] sm:$0xff] 0.0
      %123 = vst [vmem:[#allocation3 + $0x50] sm:$0xff] 0.0
      %124 = vst [vmem:[#allocation3 + $0x58] sm:$0xff] 0.0
      %125 = vst [vmem:[#allocation3 + $0x60] sm:$0xff] 0.0
      %126 = vst [vmem:[#allocation3 + $0x68] sm:$0xff] 0.0
      %127 = vst [vmem:[#allocation3 + $0x70] sm:$0xff] 0.0
      %128 = vst [vmem:[#allocation3 + $0x78] sm:$0xff] 0.0
    $region49: #{tpu_custom_call.1} parent=1 // pred_fallthru
      _
    %v129 = vld [vmem:[#allocation10] sm:$0xf]
    %v130 = vld [vmem:[#allocation10 + $0x4] sm:$0xf]
    %v131 = vld [vmem:[#allocation10 + $0x8] sm:$0xf]
    %v132 = vld [vmem:[#allocation10 + $0xc] sm:$0xf]
    %v133 = vld [vmem:[#allocation10 + $0x10] sm:$0xf]
    %v134 = vld [vmem:[#allocation10 + $0x14] sm:$0xf]
    %v135 = vld [vmem:[#allocation10 + $0x18] sm:$0xf]
    %v136 = vld [vmem:[#allocation10 + $0x1c] sm:$0xf]
    %v137 = vld [vmem:[#allocation10 + $0x20] sm:$0xf]
    %v138 = vld [vmem:[#allocation10 + $0x24] sm:$0xf]
    %v139 = vld [vmem:[#allocation10 + $0x28] sm:$0xf]
    %v140 = vld [vmem:[#allocation10 + $0x2c] sm:$0xf]
    %v141 = vld [vmem:[#allocation10 + $0x30] sm:$0xf]
    %v142 = vld [vmem:[#allocation10 + $0x34] sm:$0xf]
    %v143 = vld [vmem:[#allocation10 + $0x38] sm:$0xf]
    %v144 = vld [vmem:[#allocation10 + $0x3c] sm:$0xf]
    %v145 = vld [vmem:[#allocation4] sm:$0xff]
    %v146 = vld [vmem:[#allocation4 + $0x8] sm:$0xff]
    %v147 = vld [vmem:[#allocation4 + $0x10] sm:$0xff]
    %v148 = vld [vmem:[#allocation4 + $0x18] sm:$0xff]
    %v149 = vunpack.c.l.s8.bf16 %v145
    %v150 = vunpack.c.h.s8.bf16 %v145
    %v151 = vunpack.c.l.s8.bf16 %v146
    %v152 = vunpack.c.h.s8.bf16 %v146
    %v153 = vunpack.c.l.s8.bf16 %v147
    %v154 = vunpack.c.h.s8.bf16 %v147
    %v155 = vunpack.c.l.s8.bf16 %v148
    %v156 = vunpack.c.h.s8.bf16 %v148
    %v157 = vld [vmem:[#allocation7] sm:$0xff]
    %v158 = vld [vmem:[#allocation7 + $0x8] sm:$0xff]
    %v159 = vld [vmem:[#allocation7 + $0x10] sm:$0xff]
    %v160 = vld [vmem:[#allocation7 + $0x18] sm:$0xff]
    %v161 = vunpack.c.l.s8.bf16 %v157
    %v162 = vunpack.c.h.s8.bf16 %v157
    %v163 = vunpack.c.l.s8.bf16 %v158
    %v164 = vunpack.c.h.s8.bf16 %v158
    %v165 = vunpack.c.l.s8.bf16 %v159
    %v166 = vunpack.c.h.s8.bf16 %v159
    %v167 = vunpack.c.l.s8.bf16 %v160
    %v168 = vunpack.c.h.s8.bf16 %v160
    %v169 = vld [vmem:[#allocation2] sm:$0xff]
    %v170 = vld [vmem:[#allocation2 + $0x8] sm:$0xff]
    %v171 = vld [vmem:[#allocation2 + $0x10] sm:$0xff]
    %v172 = vld [vmem:[#allocation2 + $0x18] sm:$0xff]
    %v173 = vld [vmem:[#allocation2 + $0x20] sm:$0xff]
    %v174 = vld [vmem:[#allocation2 + $0x28] sm:$0xff]
    %v175 = vld [vmem:[#allocation2 + $0x30] sm:$0xff]
    %v176 = vld [vmem:[#allocation2 + $0x38] sm:$0xff]
    %v177 = vld [vmem:[#allocation2 + $0x40] sm:$0xff]
    %v178 = vld [vmem:[#allocation2 + $0x48] sm:$0xff]
    %v179 = vld [vmem:[#allocation2 + $0x50] sm:$0xff]
    %v180 = vld [vmem:[#allocation2 + $0x58] sm:$0xff]
    %v181 = vld [vmem:[#allocation2 + $0x60] sm:$0xff]
    %v182 = vld [vmem:[#allocation2 + $0x68] sm:$0xff]
    %v183 = vld [vmem:[#allocation2 + $0x70] sm:$0xff]
    %v184 = vld [vmem:[#allocation2 + $0x78] sm:$0xff]
    %v201 = vunpack.c.l.b16 %v129
    %v202 = vunpack.c.l.b16 %v130
    %v203 = vunpack.c.l.b16 %v131
    %v204 = vunpack.c.l.b16 %v132
    %v205 = vunpack.c.l.b16 %v133
    %v206 = vunpack.c.l.b16 %v134
    %v207 = vunpack.c.l.b16 %v135
    %v208 = vunpack.c.l.b16 %v136
    %v209 = vunpack.c.l.b16 %v137
    %v210 = vunpack.c.l.b16 %v138
    %v211 = vunpack.c.l.b16 %v139
    %v212 = vunpack.c.l.b16 %v140
    %v213 = vunpack.c.l.b16 %v141
    %v214 = vunpack.c.l.b16 %v142
    %v215 = vunpack.c.l.b16 %v143
    %v216 = vunpack.c.l.b16 %v144
    %v217 = vpack.c.b16 %v202, %v201
    %v218 = vpack.c.b16 %v204, %v203
    %v219 = vpack.c.b16 %v206, %v205
    %v220 = vpack.c.b16 %v208, %v207
    %v221 = vpack.c.b16 %v210, %v209
    %v222 = vpack.c.b16 %v212, %v211
    %v223 = vpack.c.b16 %v214, %v213
    %v224 = vpack.c.b16 %v216, %v215
    %233 = vmatprep.subr.bf16.mxu0 0
    %234 = vmatpush1.bf16.msra.mxu0 %v217
    %235 = vmatprep.subr.bf16.mxu0 0
    %236 = vmatpush1.bf16.msra.mxu0 %v218
    %237 = vmatprep.subr.bf16.mxu0 0
    %238 = vmatpush1.bf16.msra.mxu0 %v219
    %239 = vmatprep.subr.bf16.mxu0 0
    %240 = vmatpush1.bf16.msra.mxu0 %v220
    %241 = vmatprep.subr.bf16.mxu0 0
    %242 = vmatpush1.bf16.msra.mxu0 %v221
    %243 = vmatprep.subr.bf16.mxu0 0
    %244 = vmatpush1.bf16.msra.mxu0 %v222
    %245 = vmatprep.subr.bf16.mxu0 0
    %246 = vmatpush1.bf16.msra.mxu0 %v223
    %247 = vmatprep.subr.bf16.mxu0 0
    %248 = vmatpush1.bf16.msra.mxu0 %v224
    %249 = vmatprep.subr.bf16.mxu0 0
    %250 = vmatpush1.bf16.msra.mxu0 0
    %251 = vmatprep.subr.bf16.mxu0 0
    %252 = vmatpush1.bf16.msra.mxu0 0
    %253 = vmatprep.subr.bf16.mxu0 0
    %254 = vmatpush1.bf16.msra.mxu0 0
    %255 = vmatprep.subr.bf16.mxu0 0
    %256 = vmatpush1.bf16.msra.mxu0 0
    %257 = vmatprep.subr.bf16.mxu0 0
    %258 = vmatpush1.bf16.msra.mxu0 0
    %259 = vmatprep.subr.bf16.mxu0 0
    %260 = vmatpush1.bf16.msra.mxu0 0
    %261 = vmatprep.subr.bf16.mxu0 0
    %262 = vmatpush1.bf16.msra.mxu0 0
    %263 = vmatprep.subr.bf16.mxu0 0
    %264 = vmatpush1.bf16.msra.mxu0 0
    %265 = vmatprep.mubr.bf16.mxu0 0
    %266 = vmatmul.mubr.bf16.gmra.mrb[0].mxu0 %v149
    %v267 = vpop.f32.mrb[0].mxu0
    %v268 = vadd.f32 0.0, %v267
    %v269 = vpop.f32.mrb[0].mxu0
    %v270 = vpop.f32.mrb[0].mxu0
    %v271 = vadd.f32 0.0, %v270
    %v272 = vpop.f32.mrb[0].mxu0
    %273 = vmatprep.mubr.bf16.mxu0 0
    %274 = vmatmul.mubr.bf16.gmra.mrb[0].mxu0 %v150
    %v275 = vpop.f32.mrb[0].mxu0
    %v276 = vadd.f32 0.0, %v275
    %v277 = vpop.f32.mrb[0].mxu0
    %v278 = vpop.f32.mrb[0].mxu0
    %v279 = vadd.f32 0.0, %v278
    %v280 = vpop.f32.mrb[0].mxu0
    %281 = vmatprep.mubr.bf16.mxu0 0
    %282 = vmatmul.mubr.bf16.gmra.mrb[0].mxu0 %v151
    %v283 = vpop.f32.mrb[0].mxu0
    %v284 = vadd.f32 0.0, %v283
    %v285 = vpop.f32.mrb[0].mxu0
    %v286 = vpop.f32.mrb[0].mxu0
    %v287 = vadd.f32 0.0, %v286
    %v288 = vpop.f32.mrb[0].mxu0
    %289 = vmatprep.mubr.bf16.mxu0 0
    %290 = vmatmul.mubr.bf16.gmra.mrb[0].mxu0 %v152
    %v291 = vpop.f32.mrb[0].mxu0
    %v292 = vadd.f32 0.0, %v291
    %v293 = vpop.f32.mrb[0].mxu0
    %v294 = vpop.f32.mrb[0].mxu0
    %v295 = vadd.f32 0.0, %v294
    %v296 = vpop.f32.mrb[0].mxu0
    %297 = vmatprep.mubr.bf16.mxu0 0
    %298 = vmatmul.mubr.bf16.gmra.mrb[0].mxu0 %v153
    %v299 = vpop.f32.mrb[0].mxu0
    %v300 = vadd.f32 0.0, %v299
    %v301 = vpop.f32.mrb[0].mxu0
    %v302 = vpop.f32.mrb[0].mxu0
    %v303 = vadd.f32 0.0, %v302
    %v304 = vpop.f32.mrb[0].mxu0
    %305 = vmatprep.mubr.bf16.mxu0 0
    %306 = vmatmul.mubr.bf16.gmra.mrb[0].mxu0 %v154
    %v307 = vpop.f32.mrb[0].mxu0
    %v308 = vadd.f32 0.0, %v307
    %v309 = vpop.f32.mrb[0].mxu0
    %v310 = vpop.f32.mrb[0].mxu0
    %v311 = vadd.f32 0.0, %v310
    %v312 = vpop.f32.mrb[0].mxu0
    %313 = vmatprep.mubr.bf16.mxu0 0
    %314 = vmatmul.mubr.bf16.gmra.mrb[0].mxu0 %v155
    %v315 = vpop.f32.mrb[0].mxu0
    %v316 = vadd.f32 0.0, %v315
    %v317 = vpop.f32.mrb[0].mxu0
    %v318 = vpop.f32.mrb[0].mxu0
    %v319 = vadd.f32 0.0, %v318
    %v320 = vpop.f32.mrb[0].mxu0
    %321 = vmatprep.mubr.bf16.mxu0 0
    %322 = vmatmul.mubr.bf16.gmra.mrb[0].mxu0 %v156
    %v323 = vpop.f32.mrb[0].mxu0
    %v324 = vadd.f32 0.0, %v323
    %v325 = vpop.f32.mrb[0].mxu0
    %v326 = vpop.f32.mrb[0].mxu0
    %v327 = vadd.f32 0.0, %v326
    %v328 = vpop.f32.mrb[0].mxu0
    %329 = vdwg.mxu0
    %v330 = vadd.f32 %v169, %v268
    %v331 = vadd.f32 %v170, %v271
    %v332 = vadd.f32 %v171, %v276
    %v333 = vadd.f32 %v172, %v279
    %v334 = vadd.f32 %v173, %v284
    %v335 = vadd.f32 %v174, %v287
    %v336 = vadd.f32 %v175, %v292
    %v337 = vadd.f32 %v176, %v295
    %v338 = vadd.f32 %v177, %v300
    %v339 = vadd.f32 %v178, %v303
    %v340 = vadd.f32 %v179, %v308
    %v341 = vadd.f32 %v180, %v311
    %v342 = vadd.f32 %v181, %v316
    %v343 = vadd.f32 %v182, %v319
    %v344 = vadd.f32 %v183, %v324
    %v345 = vadd.f32 %v184, %v327
    %346 = vst [vmem:[#allocation2] sm:$0xff] %v330
    %347 = vst [vmem:[#allocation2 + $0x8] sm:$0xff] %v331
    %348 = vst [vmem:[#allocation2 + $0x10] sm:$0xff] %v332
    %349 = vst [vmem:[#allocation2 + $0x18] sm:$0xff] %v333
    %350 = vst [vmem:[#allocation2 + $0x20] sm:$0xff] %v334
    %351 = vst [vmem:[#allocation2 + $0x28] sm:$0xff] %v335
    %352 = vst [vmem:[#allocation2 + $0x30] sm:$0xff] %v336
    %353 = vst [vmem:[#allocation2 + $0x38] sm:$0xff] %v337
    %354 = vst [vmem:[#allocation2 + $0x40] sm:$0xff] %v338
    %355 = vst [vmem:[#allocation2 + $0x48] sm:$0xff] %v339
    %356 = vst [vmem:[#allocation2 + $0x50] sm:$0xff] %v340
    %357 = vst [vmem:[#allocation2 + $0x58] sm:$0xff] %v341
    %358 = vst [vmem:[#allocation2 + $0x60] sm:$0xff] %v342
    %359 = vst [vmem:[#allocation2 + $0x68] sm:$0xff] %v343
    %360 = vst [vmem:[#allocation2 + $0x70] sm:$0xff] %v344
    %361 = vst [vmem:[#allocation2 + $0x78] sm:$0xff] %v345
    %v362 = vld [vmem:[#allocation3] sm:$0xff]
    %v363 = vld [vmem:[#allocation3 + $0x8] sm:$0xff]
    %v364 = vld [vmem:[#allocation3 + $0x10] sm:$0xff]
    %v365 = vld [vmem:[#allocation3 + $0x18] sm:$0xff]
    %v366 = vld [vmem:[#allocation3 + $0x20] sm:$0xff]
    %v367 = vld [vmem:[#allocation3 + $0x28] sm:$0xff]
    %v368 = vld [vmem:[#allocation3 + $0x30] sm:$0xff]
    %v369 = vld [vmem:[#allocation3 + $0x38] sm:$0xff]
    %v370 = vld [vmem:[#allocation3 + $0x40] sm:$0xff]
    %v371 = vld [vmem:[#allocation3 + $0x48] sm:$0xff]
    %v372 = vld [vmem:[#allocation3 + $0x50] sm:$0xff]
    %v373 = vld [vmem:[#allocation3 + $0x58] sm:$0xff]
    %v374 = vld [vmem:[#allocation3 + $0x60] sm:$0xff]
    %v375 = vld [vmem:[#allocation3 + $0x68] sm:$0xff]
    %v376 = vld [vmem:[#allocation3 + $0x70] sm:$0xff]
    %v377 = vld [vmem:[#allocation3 + $0x78] sm:$0xff]
    %378 = vmatprep.subr.bf16.mxu0 0
    %379 = vmatpush1.bf16.msra.mxu0 %v217
    %380 = vmatprep.subr.bf16.mxu0 0
    %381 = vmatpush1.bf16.msra.mxu0 %v218
    %382 = vmatprep.subr.bf16.mxu0 0
    %383 = vmatpush1.bf16.msra.mxu0 %v219
    %384 = vmatprep.subr.bf16.mxu0 0
    %385 = vmatpush1.bf16.msra.mxu0 %v220
    %386 = vmatprep.subr.bf16.mxu0 0
    %387 = vmatpush1.bf16.msra.mxu0 %v221
    %388 = vmatprep.subr.bf16.mxu0 0
    %389 = vmatpush1.bf16.msra.mxu0 %v222
    %390 = vmatprep.subr.bf16.mxu0 0
    %391 = vmatpush1.bf16.msra.mxu0 %v223
    %392 = vmatprep.subr.bf16.mxu0 0
    %393 = vmatpush1.bf16.msra.mxu0 %v224
    %394 = vmatprep.subr.bf16.mxu0 0
    %395 = vmatpush1.bf16.msra.mxu0 0
    %396 = vmatprep.subr.bf16.mxu0 0
    %397 = vmatpush1.bf16.msra.mxu0 0
    %398 = vmatprep.subr.bf16.mxu0 0
    %399 = vmatpush1.bf16.msra.mxu0 0
    %400 = vmatprep.subr.bf16.mxu0 0
    %401 = vmatpush1.bf16.msra.mxu0 0
    %402 = vmatprep.subr.bf16.mxu0 0
    %403 = vmatpush1.bf16.msra.mxu0 0
    %404 = vmatprep.subr.bf16.mxu0 0
    %405 = vmatpush1.bf16.msra.mxu0 0
    %406 = vmatprep.subr.bf16.mxu0 0
    %407 = vmatpush1.bf16.msra.mxu0 0
    %408 = vmatprep.subr.bf16.mxu0 0
    %409 = vmatpush1.bf16.msra.mxu0 0
    %410 = vmatprep.mubr.bf16.mxu0 0
    %411 = vmatmul.mubr.bf16.gmra.mrb[0].mxu0 %v161
    %v412 = vpop.f32.mrb[0].mxu0
    %v413 = vadd.f32 0.0, %v412
    %v414 = vpop.f32.mrb[0].mxu0
    %v415 = vpop.f32.mrb[0].mxu0
    %v416 = vadd.f32 0.0, %v415
    %v417 = vpop.f32.mrb[0].mxu0
    %418 = vmatprep.mubr.bf16.mxu0 0
    %419 = vmatmul.mubr.bf16.gmra.mrb[0].mxu0 %v162
    %v420 = vpop.f32.mrb[0].mxu0
    %v421 = vadd.f32 0.0, %v420
    %v422 = vpop.f32.mrb[0].mxu0
    %v423 = vpop.f32.mrb[0].mxu0
    %v424 = vadd.f32 0.0, %v423
    %v425 = vpop.f32.mrb[0].mxu0
    %426 = vmatprep.mubr.bf16.mxu0 0
    %427 = vmatmul.mubr.bf16.gmra.mrb[0].mxu0 %v163
    %v428 = vpop.f32.mrb[0].mxu0
    %v429 = vadd.f32 0.0, %v428
    %v430 = vpop.f32.mrb[0].mxu0
    %v431 = vpop.f32.mrb[0].mxu0
    %v432 = vadd.f32 0.0, %v431
    %v433 = vpop.f32.mrb[0].mxu0
    %434 = vmatprep.mubr.bf16.mxu0 0
    %435 = vmatmul.mubr.bf16.gmra.mrb[0].mxu0 %v164
    %v436 = vpop.f32.mrb[0].mxu0
    %v437 = vadd.f32 0.0, %v436
    %v438 = vpop.f32.mrb[0].mxu0
    %v439 = vpop.f32.mrb[0].mxu0
    %v440 = vadd.f32 0.0, %v439
    %v441 = vpop.f32.mrb[0].mxu0
    %442 = vmatprep.mubr.bf16.mxu0 0
    %443 = vmatmul.mubr.bf16.gmra.mrb[0].mxu0 %v165
    %v444 = vpop.f32.mrb[0].mxu0
    %v445 = vadd.f32 0.0, %v444
    %v446 = vpop.f32.mrb[0].mxu0
    %v447 = vpop.f32.mrb[0].mxu0
    %v448 = vadd.f32 0.0, %v447
    %v449 = vpop.f32.mrb[0].mxu0
    %450 = vmatprep.mubr.bf16.mxu0 0
    %451 = vmatmul.mubr.bf16.gmra.mrb[0].mxu0 %v166
    %v452 = vpop.f32.mrb[0].mxu0
    %v453 = vadd.f32 0.0, %v452
    %v454 = vpop.f32.mrb[0].mxu0
    %v455 = vpop.f32.mrb[0].mxu0
    %v456 = vadd.f32 0.0, %v455
    %v457 = vpop.f32.mrb[0].mxu0
    %458 = vmatprep.mubr.bf16.mxu0 0
    %459 = vmatmul.mubr.bf16.gmra.mrb[0].mxu0 %v167
    %v460 = vpop.f32.mrb[0].mxu0
    %v461 = vadd.f32 0.0, %v460
    %v462 = vpop.f32.mrb[0].mxu0
    %v463 = vpop.f32.mrb[0].mxu0
    %v464 = vadd.f32 0.0, %v463
    %v465 = vpop.f32.mrb[0].mxu0
    %466 = vmatprep.mubr.bf16.mxu0 0
    %467 = vmatmul.mubr.bf16.gmra.mrb[0].mxu0 %v168
    %v468 = vpop.f32.mrb[0].mxu0
    %v469 = vadd.f32 0.0, %v468
    %v470 = vpop.f32.mrb[0].mxu0
    %v471 = vpop.f32.mrb[0].mxu0
    %v472 = vadd.f32 0.0, %v471
    %v473 = vpop.f32.mrb[0].mxu0
    %474 = vdwg.mxu0
    %v475 = vadd.f32 %v362, %v413
    %v476 = vadd.f32 %v363, %v416
    %v477 = vadd.f32 %v364, %v421
    %v478 = vadd.f32 %v365, %v424
    %v479 = vadd.f32 %v366, %v429
    %v480 = vadd.f32 %v367, %v432
    %v481 = vadd.f32 %v368, %v437
    %v482 = vadd.f32 %v369, %v440
    %v483 = vadd.f32 %v370, %v445
    %v484 = vadd.f32 %v371, %v448
    %v485 = vadd.f32 %v372, %v453
    %v486 = vadd.f32 %v373, %v456
    %v487 = vadd.f32 %v374, %v461
    %v488 = vadd.f32 %v375, %v464
    %v489 = vadd.f32 %v376, %v469
    %v490 = vadd.f32 %v377, %v472
    %491 = vst [vmem:[#allocation3] sm:$0xff] %v475
    %492 = vst [vmem:[#allocation3 + $0x8] sm:$0xff] %v476
    %493 = vst [vmem:[#allocation3 + $0x10] sm:$0xff] %v477
    %494 = vst [vmem:[#allocation3 + $0x18] sm:$0xff] %v478
    %495 = vst [vmem:[#allocation3 + $0x20] sm:$0xff] %v479
    %496 = vst [vmem:[#allocation3 + $0x28] sm:$0xff] %v480
    %497 = vst [vmem:[#allocation3 + $0x30] sm:$0xff] %v481
    %498 = vst [vmem:[#allocation3 + $0x38] sm:$0xff] %v482
    %499 = vst [vmem:[#allocation3 + $0x40] sm:$0xff] %v483
    %500 = vst [vmem:[#allocation3 + $0x48] sm:$0xff] %v484
    %501 = vst [vmem:[#allocation3 + $0x50] sm:$0xff] %v485
    %502 = vst [vmem:[#allocation3 + $0x58] sm:$0xff] %v486
    %503 = vst [vmem:[#allocation3 + $0x60] sm:$0xff] %v487
    %504 = vst [vmem:[#allocation3 + $0x68] sm:$0xff] %v488
    %505 = vst [vmem:[#allocation3 + $0x70] sm:$0xff] %v489
    %506 = vst [vmem:[#allocation3 + $0x78] sm:$0xff] %v490
    // Predicated region
    $region50: #{tpu_custom_call.1} parent=1 // pred_check
      %p507 = pneg %p93
    $region51: #{tpu_custom_call.1} parent=1 // pred_check_branch
      %509 = sbr.rel (%p507) target = $region53
    $region52: #{tpu_custom_call.1} parent=1 // pred_region
      %v510 = vld [vmem:[#allocation2] sm:$0xff]
      %v511 = vld [vmem:[#allocation2 + $0x8] sm:$0xff]
      %v512 = vld [vmem:[#allocation2 + $0x10] sm:$0xff]
      %v513 = vld [vmem:[#allocation2 + $0x18] sm:$0xff]
      %v514 = vld [vmem:[#allocation2 + $0x20] sm:$0xff]
      %v515 = vld [vmem:[#allocation2 + $0x28] sm:$0xff]
      %v516 = vld [vmem:[#allocation2 + $0x30] sm:$0xff]
      %v517 = vld [vmem:[#allocation2 + $0x38] sm:$0xff]
      %v518 = vld [vmem:[#allocation2 + $0x40] sm:$0xff]
      %v519 = vld [vmem:[#allocation2 + $0x48] sm:$0xff]
      %v520 = vld [vmem:[#allocation2 + $0x50] sm:$0xff]
      %v521 = vld [vmem:[#allocation2 + $0x58] sm:$0xff]
      %v522 = vld [vmem:[#allocation2 + $0x60] sm:$0xff]
      %v523 = vld [vmem:[#allocation2 + $0x68] sm:$0xff]
      %v524 = vld [vmem:[#allocation2 + $0x70] sm:$0xff]
      %v525 = vld [vmem:[#allocation2 + $0x78] sm:$0xff]
      %v526 = vmax.f32 %v510, 1.0
      %v527 = vmax.f32 %v511, 1.0
      %v528 = vmax.f32 %v512, 1.0
      %v529 = vmax.f32 %v513, 1.0
      %v530 = vmax.f32 %v514, 1.0
      %v531 = vmax.f32 %v515, 1.0
      %v532 = vmax.f32 %v516, 1.0
      %v533 = vmax.f32 %v517, 1.0
      %v534 = vmax.f32 %v518, 1.0
      %v535 = vmax.f32 %v519, 1.0
      %v536 = vmax.f32 %v520, 1.0
      %v537 = vmax.f32 %v521, 1.0
      %v538 = vmax.f32 %v522, 1.0
      %v539 = vmax.f32 %v523, 1.0
      %v540 = vmax.f32 %v524, 1.0
      %v541 = vmax.f32 %v525, 1.0
      %v542 = vrcp.pop %v526
      %v543 = vmul.f32 1.0, %v542
      %v544 = vrcp.pop %v527
      %v545 = vmul.f32 1.0, %v544
      %v546 = vrcp.pop %v528
      %v547 = vmul.f32 1.0, %v546
      %v548 = vrcp.pop %v529
      %v549 = vmul.f32 1.0, %v548
      %v550 = vrcp.pop %v530
      %v551 = vmul.f32 1.0, %v550
      %v552 = vrcp.pop %v531
      %v553 = vmul.f32 1.0, %v552
      %v554 = vrcp.pop %v532
      %v555 = vmul.f32 1.0, %v554
      %v556 = vrcp.pop %v533
      %v557 = vmul.f32 1.0, %v556
      %v558 = vrcp.pop %v534
      %v559 = vmul.f32 1.0, %v558
      %v560 = vrcp.pop %v535
      %v561 = vmul.f32 1.0, %v560
      %v562 = vrcp.pop %v536
      %v563 = vmul.f32 1.0, %v562
      %v564 = vrcp.pop %v537
      %v565 = vmul.f32 1.0, %v564
      %v566 = vrcp.pop %v538
      %v567 = vmul.f32 1.0, %v566
      %v568 = vrcp.pop %v539
      %v569 = vmul.f32 1.0, %v568
      %v570 = vrcp.pop %v540
      %v571 = vmul.f32 1.0, %v570
      %v572 = vrcp.pop %v541
      %v573 = vmul.f32 1.0, %v572
      %v574 = vld [vmem:[#allocation3] sm:$0xff]
      %v575 = vld [vmem:[#allocation3 + $0x8] sm:$0xff]
      %v576 = vld [vmem:[#allocation3 + $0x10] sm:$0xff]
      %v577 = vld [vmem:[#allocation3 + $0x18] sm:$0xff]
      %v578 = vld [vmem:[#allocation3 + $0x20] sm:$0xff]
      %v579 = vld [vmem:[#allocation3 + $0x28] sm:$0xff]
      %v580 = vld [vmem:[#allocation3 + $0x30] sm:$0xff]
      %v581 = vld [vmem:[#allocation3 + $0x38] sm:$0xff]
      %v582 = vld [vmem:[#allocation3 + $0x40] sm:$0xff]
      %v583 = vld [vmem:[#allocation3 + $0x48] sm:$0xff]
      %v584 = vld [vmem:[#allocation3 + $0x50] sm:$0xff]
      %v585 = vld [vmem:[#allocation3 + $0x58] sm:$0xff]
      %v586 = vld [vmem:[#allocation3 + $0x60] sm:$0xff]
      %v587 = vld [vmem:[#allocation3 + $0x68] sm:$0xff]
      %v588 = vld [vmem:[#allocation3 + $0x70] sm:$0xff]
      %v589 = vld [vmem:[#allocation3 + $0x78] sm:$0xff]
      %v590 = vmax.f32 %v574, 1.0
      %v591 = vmax.f32 %v575, 1.0
      %v592 = vmax.f32 %v576, 1.0
      %v593 = vmax.f32 %v577, 1.0
      %v594 = vmax.f32 %v578, 1.0
      %v595 = vmax.f32 %v579, 1.0
      %v596 = vmax.f32 %v580, 1.0
      %v597 = vmax.f32 %v581, 1.0
      %v598 = vmax.f32 %v582, 1.0
      %v599 = vmax.f32 %v583, 1.0
      %v600 = vmax.f32 %v584, 1.0
      %v601 = vmax.f32 %v585, 1.0
      %v602 = vmax.f32 %v586, 1.0
      %v603 = vmax.f32 %v587, 1.0
      %v604 = vmax.f32 %v588, 1.0
      %v605 = vmax.f32 %v589, 1.0
      %v606 = vrcp.pop %v590
      %v607 = vmul.f32 1.0, %v606
      %v608 = vrcp.pop %v591
      %v609 = vmul.f32 1.0, %v608
      %v610 = vrcp.pop %v592
      %v611 = vmul.f32 1.0, %v610
      %v612 = vrcp.pop %v593
      %v613 = vmul.f32 1.0, %v612
      %v614 = vrcp.pop %v594
      %v615 = vmul.f32 1.0, %v614
      %v616 = vrcp.pop %v595
      %v617 = vmul.f32 1.0, %v616
      %v618 = vrcp.pop %v596
      %v619 = vmul.f32 1.0, %v618
      %v620 = vrcp.pop %v597
      %v621 = vmul.f32 1.0, %v620
      %v622 = vrcp.pop %v598
      %v623 = vmul.f32 1.0, %v622
      %v624 = vrcp.pop %v599
      %v625 = vmul.f32 1.0, %v624
      %v626 = vrcp.pop %v600
      %v627 = vmul.f32 1.0, %v626
      %v628 = vrcp.pop %v601
      %v629 = vmul.f32 1.0, %v628
      %v630 = vrcp.pop %v602
      %v631 = vmul.f32 1.0, %v630
      %v632 = vrcp.pop %v603
      %v633 = vmul.f32 1.0, %v632
      %v634 = vrcp.pop %v604
      %v635 = vmul.f32 1.0, %v634
      %v636 = vrcp.pop %v605
      %v637 = vmul.f32 1.0, %v636
      %639 = vset.pattern.permute.xlu0 32
      %640 = vperm.xlu0 %639, %v543
      %v641 = vpop.permute.xlu0 %640
      %644 = vset.pattern.permute.xlu0 32
      %645 = vperm.xlu0 %644, %v545
      %v646 = vpop.permute.xlu0 %645
      %649 = vset.pattern.permute.xlu0 32
      %650 = vperm.xlu0 %649, %v547
      %v651 = vpop.permute.xlu0 %650
      %654 = vset.pattern.permute.xlu0 32
      %655 = vperm.xlu0 %654, %v549
      %v656 = vpop.permute.xlu0 %655
      %659 = vset.pattern.permute.xlu0 32
      %660 = vperm.xlu0 %659, %v551
      %v661 = vpop.permute.xlu0 %660
      %664 = vset.pattern.permute.xlu0 32
      %665 = vperm.xlu0 %664, %v553
      %v666 = vpop.permute.xlu0 %665
      %669 = vset.pattern.permute.xlu0 32
      %670 = vperm.xlu0 %669, %v555
      %v671 = vpop.permute.xlu0 %670
      %674 = vset.pattern.permute.xlu0 32
      %675 = vperm.xlu0 %674, %v557
      %v676 = vpop.permute.xlu0 %675
      %679 = vset.pattern.permute.xlu0 32
      %680 = vperm.xlu0 %679, %v559
      %v681 = vpop.permute.xlu0 %680
      %684 = vset.pattern.permute.xlu0 32
      %685 = vperm.xlu0 %684, %v561
      %v686 = vpop.permute.xlu0 %685
      %689 = vset.pattern.permute.xlu0 32
      %690 = vperm.xlu0 %689, %v563
      %v691 = vpop.permute.xlu0 %690
      %694 = vset.pattern.permute.xlu0 32
      %695 = vperm.xlu0 %694, %v565
      %v696 = vpop.permute.xlu0 %695
      %699 = vset.pattern.permute.xlu0 32
      %700 = vperm.xlu0 %699, %v567
      %v701 = vpop.permute.xlu0 %700
      %704 = vset.pattern.permute.xlu0 32
      %705 = vperm.xlu0 %704, %v569
      %v706 = vpop.permute.xlu0 %705
      %709 = vset.pattern.permute.xlu0 32
      %710 = vperm.xlu0 %709, %v571
      %v711 = vpop.permute.xlu0 %710
      %714 = vset.pattern.permute.xlu0 32
      %715 = vperm.xlu0 %714, %v573
      %v716 = vpop.permute.xlu0 %715
      %v718 = vmul.f32 %v510, %v641
      %v719 = vmul.f32 %v511, %v646
      %v720 = vmul.f32 %v512, %v651
      %v721 = vmul.f32 %v513, %v656
      %v722 = vmul.f32 %v514, %v661
      %v723 = vmul.f32 %v515, %v666
      %v724 = vmul.f32 %v516, %v671
      %v725 = vmul.f32 %v517, %v676
      %v726 = vmul.f32 %v518, %v681
      %v727 = vmul.f32 %v519, %v686
      %v728 = vmul.f32 %v520, %v691
      %v729 = vmul.f32 %v521, %v696
      %v730 = vmul.f32 %v522, %v701
      %v731 = vmul.f32 %v523, %v706
      %v732 = vmul.f32 %v524, %v711
      %v733 = vmul.f32 %v525, %v716
      %735 = vset.pattern.permute.xlu0 32
      %736 = vperm.xlu0 %735, %v607
      %v737 = vpop.permute.xlu0 %736
      %740 = vset.pattern.permute.xlu0 32
      %741 = vperm.xlu0 %740, %v609
      %v742 = vpop.permute.xlu0 %741
      %745 = vset.pattern.permute.xlu0 32
      %746 = vperm.xlu0 %745, %v611
      %v747 = vpop.permute.xlu0 %746
      %750 = vset.pattern.permute.xlu0 32
      %751 = vperm.xlu0 %750, %v613
      %v752 = vpop.permute.xlu0 %751
      %755 = vset.pattern.permute.xlu0 32
      %756 = vperm.xlu0 %755, %v615
      %v757 = vpop.permute.xlu0 %756
      %760 = vset.pattern.permute.xlu0 32
      %761 = vperm.xlu0 %760, %v617
      %v762 = vpop.permute.xlu0 %761
      %765 = vset.pattern.permute.xlu0 32
      %766 = vperm.xlu0 %765, %v619
      %v767 = vpop.permute.xlu0 %766
      %770 = vset.pattern.permute.xlu0 32
      %771 = vperm.xlu0 %770, %v621
      %v772 = vpop.permute.xlu0 %771
      %775 = vset.pattern.permute.xlu0 32
      %776 = vperm.xlu0 %775, %v623
      %v777 = vpop.permute.xlu0 %776
      %780 = vset.pattern.permute.xlu0 32
      %781 = vperm.xlu0 %780, %v625
      %v782 = vpop.permute.xlu0 %781
      %785 = vset.pattern.permute.xlu0 32
      %786 = vperm.xlu0 %785, %v627
      %v787 = vpop.permute.xlu0 %786
      %790 = vset.pattern.permute.xlu0 32
      %791 = vperm.xlu0 %790, %v629
      %v792 = vpop.permute.xlu0 %791
      %795 = vset.pattern.permute.xlu0 32
      %796 = vperm.xlu0 %795, %v631
      %v797 = vpop.permute.xlu0 %796
      %800 = vset.pattern.permute.xlu0 32
      %801 = vperm.xlu0 %800, %v633
      %v802 = vpop.permute.xlu0 %801
      %805 = vset.pattern.permute.xlu0 32
      %806 = vperm.xlu0 %805, %v635
      %v807 = vpop.permute.xlu0 %806
      %810 = vset.pattern.permute.xlu0 32
      %811 = vperm.xlu0 %810, %v637
      %v812 = vpop.permute.xlu0 %811
      %v814 = vmul.f32 %v574, %v737
      %v815 = vmul.f32 %v575, %v742
      %v816 = vmul.f32 %v576, %v747
      %v817 = vmul.f32 %v577, %v752
      %v818 = vmul.f32 %v578, %v757
      %v819 = vmul.f32 %v579, %v762
      %v820 = vmul.f32 %v580, %v767
      %v821 = vmul.f32 %v581, %v772
      %v822 = vmul.f32 %v582, %v777
      %v823 = vmul.f32 %v583, %v782
      %v824 = vmul.f32 %v584, %v787
      %v825 = vmul.f32 %v585, %v792
      %v826 = vmul.f32 %v586, %v797
      %v827 = vmul.f32 %v587, %v802
      %v828 = vmul.f32 %v588, %v807
      %v829 = vmul.f32 %v589, %v812
      %v830 = vld [vmem:[#allocation9] sm:$0xff]
      %v831 = vld [vmem:[#allocation9 + $0x8] sm:$0xff]
      %v832 = vld [vmem:[#allocation9 + $0x10] sm:$0xff]
      %v833 = vld [vmem:[#allocation9 + $0x18] sm:$0xff]
      %v834 = vld [vmem:[#allocation9 + $0x20] sm:$0xff]
      %v835 = vld [vmem:[#allocation9 + $0x28] sm:$0xff]
      %v836 = vld [vmem:[#allocation9 + $0x30] sm:$0xff]
      %v837 = vld [vmem:[#allocation9 + $0x38] sm:$0xff]
      %v838 = vld [vmem:[#allocation9 + $0x40] sm:$0xff]
      %v839 = vld [vmem:[#allocation9 + $0x48] sm:$0xff]
      %v840 = vld [vmem:[#allocation9 + $0x50] sm:$0xff]
      %v841 = vld [vmem:[#allocation9 + $0x58] sm:$0xff]
      %v842 = vld [vmem:[#allocation9 + $0x60] sm:$0xff]
      %v843 = vld [vmem:[#allocation9 + $0x68] sm:$0xff]
      %v844 = vld [vmem:[#allocation9 + $0x70] sm:$0xff]
      %v845 = vld [vmem:[#allocation9 + $0x78] sm:$0xff]
      %v846 = vld [vmem:[#allocation12] sm:$0xff]
      %v847 = vld [vmem:[#allocation12 + $0x8] sm:$0xff]
      %v848 = vld [vmem:[#allocation12 + $0x10] sm:$0xff]
      %v849 = vld [vmem:[#allocation12 + $0x18] sm:$0xff]
      %v850 = vld [vmem:[#allocation12 + $0x20] sm:$0xff]
      %v851 = vld [vmem:[#allocation12 + $0x28] sm:$0xff]
      %v852 = vld [vmem:[#allocation12 + $0x30] sm:$0xff]
      %v853 = vld [vmem:[#allocation12 + $0x38] sm:$0xff]
      %v854 = vld [vmem:[#allocation12 + $0x40] sm:$0xff]
      %v855 = vld [vmem:[#allocation12 + $0x48] sm:$0xff]
      %v856 = vld [vmem:[#allocation12 + $0x50] sm:$0xff]
      %v857 = vld [vmem:[#allocation12 + $0x58] sm:$0xff]
      %v858 = vld [vmem:[#allocation12 + $0x60] sm:$0xff]
      %v859 = vld [vmem:[#allocation12 + $0x68] sm:$0xff]
      %v860 = vld [vmem:[#allocation12 + $0x70] sm:$0xff]
      %v861 = vld [vmem:[#allocation12 + $0x78] sm:$0xff]
      %v862 = vld [vmem:[#allocation12 + $0x80] sm:$0xff]
      %v863 = vld [vmem:[#allocation12 + $0x88] sm:$0xff]
      %v864 = vld [vmem:[#allocation12 + $0x90] sm:$0xff]
      %v865 = vld [vmem:[#allocation12 + $0x98] sm:$0xff]
      %v866 = vld [vmem:[#allocation12 + $0xa0] sm:$0xff]
      %v867 = vld [vmem:[#allocation12 + $0xa8] sm:$0xff]
      %v868 = vld [vmem:[#allocation12 + $0xb0] sm:$0xff]
      %v869 = vld [vmem:[#allocation12 + $0xb8] sm:$0xff]
      %v870 = vld [vmem:[#allocation12 + $0xc0] sm:$0xff]
      %v871 = vld [vmem:[#allocation12 + $0xc8] sm:$0xff]
      %v872 = vld [vmem:[#allocation12 + $0xd0] sm:$0xff]
      %v873 = vld [vmem:[#allocation12 + $0xd8] sm:$0xff]
      %v874 = vld [vmem:[#allocation12 + $0xe0] sm:$0xff]
      %v875 = vld [vmem:[#allocation12 + $0xe8] sm:$0xff]
      %v876 = vld [vmem:[#allocation12 + $0xf0] sm:$0xff]
      %v877 = vld [vmem:[#allocation12 + $0xf8] sm:$0xff]
      %878 = vmatprep.subr.mxu0 0.0
      %879 = vmatpush1.msra.mxu0 %v862
      %880 = vmatprep.subr.mxu0 0.0
      %881 = vmatpush1.msra.mxu0 %v863
      %882 = vmatprep.subr.mxu0 0.0
      %883 = vmatpush1.msra.mxu0 %v864
      %884 = vmatprep.subr.mxu0 0.0
      %885 = vmatpush1.msra.mxu0 %v865
      %886 = vmatprep.subr.mxu0 0.0
      %887 = vmatpush1.msra.mxu0 %v866
      %888 = vmatprep.subr.mxu0 0.0
      %889 = vmatpush1.msra.mxu0 %v867
      %890 = vmatprep.subr.mxu0 0.0
      %891 = vmatpush1.msra.mxu0 %v868
      %892 = vmatprep.subr.mxu0 0.0
      %893 = vmatpush1.msra.mxu0 %v869
      %894 = vmatprep.subr.mxu0 0.0
      %895 = vmatpush1.msra.mxu0 %v870
      %896 = vmatprep.subr.mxu0 0.0
      %897 = vmatpush1.msra.mxu0 %v871
      %898 = vmatprep.subr.mxu0 0.0
      %899 = vmatpush1.msra.mxu0 %v872
      %900 = vmatprep.subr.mxu0 0.0
      %901 = vmatpush1.msra.mxu0 %v873
      %902 = vmatprep.subr.mxu0 0.0
      %903 = vmatpush1.msra.mxu0 %v874
      %904 = vmatprep.subr.mxu0 0.0
      %905 = vmatpush1.msra.mxu0 %v875
      %906 = vmatprep.subr.mxu0 0.0
      %907 = vmatpush1.msra.mxu0 %v876
      %908 = vmatprep.subr.mxu0 0.0
      %909 = vmatpush1.msra.mxu0 %v877
      %910 = vmatprep.subr.mxu0 0.0
      %911 = vmatpush1.msra.mxu0 0.0
      %912 = vmatprep.subr.mxu0 0.0
      %913 = vmatpush1.msra.mxu0 0.0
      %914 = vmatprep.subr.mxu0 0.0
      %915 = vmatpush1.msra.mxu0 0.0
      %916 = vmatprep.subr.mxu0 0.0
      %917 = vmatpush1.msra.mxu0 0.0
      %918 = vmatprep.subr.mxu0 0.0
      %919 = vmatpush1.msra.mxu0 0.0
      %920 = vmatprep.subr.mxu0 0.0
      %921 = vmatpush1.msra.mxu0 0.0
      %922 = vmatprep.subr.mxu0 0.0
      %923 = vmatpush1.msra.mxu0 0.0
      %924 = vmatprep.subr.mxu0 0.0
      %925 = vmatpush1.msra.mxu0 0.0
      %926 = vmatprep.subr.mxu0 0.0
      %927 = vmatpush1.msra.mxu0 0.0
      %928 = vmatprep.subr.mxu0 0.0
      %929 = vmatpush1.msra.mxu0 0.0
      %930 = vmatprep.subr.mxu0 0.0
      %931 = vmatpush1.msra.mxu0 0.0
      %932 = vmatprep.subr.mxu0 0.0
      %933 = vmatpush1.msra.mxu0 0.0
      %934 = vmatprep.subr.mxu0 0.0
      %935 = vmatpush1.msra.mxu0 0.0
      %936 = vmatprep.subr.mxu0 0.0
      %937 = vmatpush1.msra.mxu0 0.0
      %938 = vmatprep.subr.mxu0 0.0
      %939 = vmatpush1.msra.mxu0 0.0
      %940 = vmatprep.subr.mxu0 0.0
      %941 = vmatpush1.msra.mxu0 0.0
      %942 = vmatprep.mubr.f32.mxu0 0.0
      %943 = vmatmul.mubr.f32.gmra.mrb[0].mxu0 %v718
      %v944 = vpop.f32.mrb[0].mxu0
      %v945 = vadd.f32 0.0, %v944
      %v946 = vpop.f32.mrb[0].mxu0
      %947 = vmatprep.mubr.f32.mxu0 0.0
      %948 = vmatmul.mubr.f32.gmra.mrb[0].mxu0 %v719
      %v949 = vpop.f32.mrb[0].mxu0
      %v950 = vadd.f32 0.0, %v949
      %v951 = vpop.f32.mrb[0].mxu0
      %952 = vmatprep.mubr.f32.mxu0 0.0
      %953 = vmatmul.mubr.f32.gmra.mrb[0].mxu0 %v720
      %v954 = vpop.f32.mrb[0].mxu0
      %v955 = vadd.f32 0.0, %v954
      %v956 = vpop.f32.mrb[0].mxu0
      %957 = vmatprep.mubr.f32.mxu0 0.0
      %958 = vmatmul.mubr.f32.gmra.mrb[0].mxu0 %v721
      %v959 = vpop.f32.mrb[0].mxu0
      %v960 = vadd.f32 0.0, %v959
      %v961 = vpop.f32.mrb[0].mxu0
      %962 = vmatprep.mubr.f32.mxu0 0.0
      %963 = vmatmul.mubr.f32.gmra.mrb[0].mxu0 %v722
      %v964 = vpop.f32.mrb[0].mxu0
      %v965 = vadd.f32 0.0, %v964
      %v966 = vpop.f32.mrb[0].mxu0
      %967 = vmatprep.mubr.f32.mxu0 0.0
      %968 = vmatmul.mubr.f32.gmra.mrb[0].mxu0 %v723
      %v969 = vpop.f32.mrb[0].mxu0
      %v970 = vadd.f32 0.0, %v969
      %v971 = vpop.f32.mrb[0].mxu0
      %972 = vmatprep.mubr.f32.mxu0 0.0
      %973 = vmatmul.mubr.f32.gmra.mrb[0].mxu0 %v724
      %v974 = vpop.f32.mrb[0].mxu0
      %v975 = vadd.f32 0.0, %v974
      %v976 = vpop.f32.mrb[0].mxu0
      %977 = vmatprep.mubr.f32.mxu0 0.0
      %978 = vmatmul.mubr.f32.gmra.mrb[0].mxu0 %v725
      %v979 = vpop.f32.mrb[0].mxu0
      %v980 = vadd.f32 0.0, %v979
      %v981 = vpop.f32.mrb[0].mxu0
      %982 = vmatprep.mubr.f32.mxu0 0.0
      %983 = vmatmul.mubr.f32.gmra.mrb[0].mxu0 %v726
      %v984 = vpop.f32.mrb[0].mxu0
      %v985 = vadd.f32 0.0, %v984
      %v986 = vpop.f32.mrb[0].mxu0
      %987 = vmatprep.mubr.f32.mxu0 0.0
      %988 = vmatmul.mubr.f32.gmra.mrb[0].mxu0 %v727
      %v989 = vpop.f32.mrb[0].mxu0
      %v990 = vadd.f32 0.0, %v989
      %v991 = vpop.f32.mrb[0].mxu0
      %992 = vmatprep.mubr.f32.mxu0 0.0
      %993 = vmatmul.mubr.f32.gmra.mrb[0].mxu0 %v728
      %v994 = vpop.f32.mrb[0].mxu0
      %v995 = vadd.f32 0.0, %v994
      %v996 = vpop.f32.mrb[0].mxu0
      %997 = vmatprep.mubr.f32.mxu0 0.0
      %998 = vmatmul.mubr.f32.gmra.mrb[0].mxu0 %v729
      %v999 = vpop.f32.mrb[0].mxu0
      %v1000 = vadd.f32 0.0, %v999
      %v1001 = vpop.f32.mrb[0].mxu0
      %1002 = vmatprep.mubr.f32.mxu0 0.0
      %1003 = vmatmul.mubr.f32.gmra.mrb[0].mxu0 %v730
      %v1004 = vpop.f32.mrb[0].mxu0
      %v1005 = vadd.f32 0.0, %v1004
      %v1006 = vpop.f32.mrb[0].mxu0
      %1007 = vmatprep.mubr.f32.mxu0 0.0
      %1008 = vmatmul.mubr.f32.gmra.mrb[0].mxu0 %v731
      %v1009 = vpop.f32.mrb[0].mxu0
      %v1010 = vadd.f32 0.0, %v1009
      %v1011 = vpop.f32.mrb[0].mxu0
      %1012 = vmatprep.mubr.f32.mxu0 0.0
      %1013 = vmatmul.mubr.f32.gmra.mrb[0].mxu0 %v732
      %v1014 = vpop.f32.mrb[0].mxu0
      %v1015 = vadd.f32 0.0, %v1014
      %v1016 = vpop.f32.mrb[0].mxu0
      %1017 = vmatprep.mubr.f32.mxu0 0.0
      %1018 = vmatmul.mubr.f32.gmra.mrb[0].mxu0 %v733
      %v1019 = vpop.f32.mrb[0].mxu0
      %v1020 = vadd.f32 0.0, %v1019
      %v1021 = vpop.f32.mrb[0].mxu0
      %1022 = vdwg.mxu0
      %1023 = vmatprep.subr.mxu0 0.0
      %1024 = vmatpush1.msra.mxu0 %v846
      %1025 = vmatprep.subr.mxu0 0.0
      %1026 = vmatpush1.msra.mxu0 %v847
      %1027 = vmatprep.subr.mxu0 0.0
      %1028 = vmatpush1.msra.mxu0 %v848
      %1029 = vmatprep.subr.mxu0 0.0
      %1030 = vmatpush1.msra.mxu0 %v849
      %1031 = vmatprep.subr.mxu0 0.0
      %1032 = vmatpush1.msra.mxu0 %v850
      %1033 = vmatprep.subr.mxu0 0.0
      %1034 = vmatpush1.msra.mxu0 %v851
      %1035 = vmatprep.subr.mxu0 0.0
      %1036 = vmatpush1.msra.mxu0 %v852
      %1037 = vmatprep.subr.mxu0 0.0
      %1038 = vmatpush1.msra.mxu0 %v853
      %1039 = vmatprep.subr.mxu0 0.0
      %1040 = vmatpush1.msra.mxu0 %v854
      %1041 = vmatprep.subr.mxu0 0.0
      %1042 = vmatpush1.msra.mxu0 %v855
      %1043 = vmatprep.subr.mxu0 0.0
      %1044 = vmatpush1.msra.mxu0 %v856
      %1045 = vmatprep.subr.mxu0 0.0
      %1046 = vmatpush1.msra.mxu0 %v857
      %1047 = vmatprep.subr.mxu0 0.0
      %1048 = vmatpush1.msra.mxu0 %v858
      %1049 = vmatprep.subr.mxu0 0.0
      %1050 = vmatpush1.msra.mxu0 %v859
      %1051 = vmatprep.subr.mxu0 0.0
      %1052 = vmatpush1.msra.mxu0 %v860
      %1053 = vmatprep.subr.mxu0 0.0
      %1054 = vmatpush1.msra.mxu0 %v861
      %1055 = vmatprep.subr.mxu0 0.0
      %1056 = vmatpush1.msra.mxu0 0.0
      %1057 = vmatprep.subr.mxu0 0.0
      %1058 = vmatpush1.msra.mxu0 0.0
      %1059 = vmatprep.subr.mxu0 0.0
      %1060 = vmatpush1.msra.mxu0 0.0
      %1061 = vmatprep.subr.mxu0 0.0
      %1062 = vmatpush1.msra.mxu0 0.0
      %1063 = vmatprep.subr.mxu0 0.0
      %1064 = vmatpush1.msra.mxu0 0.0
      %1065 = vmatprep.subr.mxu0 0.0
      %1066 = vmatpush1.msra.mxu0 0.0
      %1067 = vmatprep.subr.mxu0 0.0
      %1068 = vmatpush1.msra.mxu0 0.0
      %1069 = vmatprep.subr.mxu0 0.0
      %1070 = vmatpush1.msra.mxu0 0.0
      %1071 = vmatprep.subr.mxu0 0.0
      %1072 = vmatpush1.msra.mxu0 0.0
      %1073 = vmatprep.subr.mxu0 0.0
      %1074 = vmatpush1.msra.mxu0 0.0
      %1075 = vmatprep.subr.mxu0 0.0
      %1076 = vmatpush1.msra.mxu0 0.0
      %1077 = vmatprep.subr.mxu0 0.0
      %1078 = vmatpush1.msra.mxu0 0.0
      %1079 = vmatprep.subr.mxu0 0.0
      %1080 = vmatpush1.msra.mxu0 0.0
      %1081 = vmatprep.subr.mxu0 0.0
      %1082 = vmatpush1.msra.mxu0 0.0
      %1083 = vmatprep.subr.mxu0 0.0
      %1084 = vmatpush1.msra.mxu0 0.0
      %1085 = vmatprep.subr.mxu0 0.0
      %1086 = vmatpush1.msra.mxu0 0.0
      %1087 = vmatprep.mubr.f32.mxu0 0.0
      %1088 = vmatmul.mubr.f32.gmra.mrb[0].mxu0 %v830
      %v1089 = vpop.f32.mrb[0].mxu0
      %v1090 = vadd.f32 %v945, %v1089
      %v1091 = vpop.f32.mrb[0].mxu0
      %1092 = vmatprep.mubr.f32.mxu0 0.0
      %1093 = vmatmul.mubr.f32.gmra.mrb[0].mxu0 %v831
      %v1094 = vpop.f32.mrb[0].mxu0
      %v1095 = vadd.f32 %v950, %v1094
      %v1096 = vpop.f32.mrb[0].mxu0
      %1097 = vmatprep.mubr.f32.mxu0 0.0
      %1098 = vmatmul.mubr.f32.gmra.mrb[0].mxu0 %v832
      %v1099 = vpop.f32.mrb[0].mxu0
      %v1100 = vadd.f32 %v955, %v1099
      %v1101 = vpop.f32.mrb[0].mxu0
      %1102 = vmatprep.mubr.f32.mxu0 0.0
      %1103 = vmatmul.mubr.f32.gmra.mrb[0].mxu0 %v833
      %v1104 = vpop.f32.mrb[0].mxu0
      %v1105 = vadd.f32 %v960, %v1104
      %v1106 = vpop.f32.mrb[0].mxu0
      %1107 = vmatprep.mubr.f32.mxu0 0.0
      %1108 = vmatmul.mubr.f32.gmra.mrb[0].mxu0 %v834
      %v1109 = vpop.f32.mrb[0].mxu0
      %v1110 = vadd.f32 %v965, %v1109
      %v1111 = vpop.f32.mrb[0].mxu0
      %1112 = vmatprep.mubr.f32.mxu0 0.0
      %1113 = vmatmul.mubr.f32.gmra.mrb[0].mxu0 %v835
      %v1114 = vpop.f32.mrb[0].mxu0
      %v1115 = vadd.f32 %v970, %v1114
      %v1116 = vpop.f32.mrb[0].mxu0
      %1117 = vmatprep.mubr.f32.mxu0 0.0
      %1118 = vmatmul.mubr.f32.gmra.mrb[0].mxu0 %v836
      %v1119 = vpop.f32.mrb[0].mxu0
      %v1120 = vadd.f32 %v975, %v1119
      %v1121 = vpop.f32.mrb[0].mxu0
      %1122 = vmatprep.mubr.f32.mxu0 0.0
      %1123 = vmatmul.mubr.f32.gmra.mrb[0].mxu0 %v837
      %v1124 = vpop.f32.mrb[0].mxu0
      %v1125 = vadd.f32 %v980, %v1124
      %v1126 = vpop.f32.mrb[0].mxu0
      %1127 = vmatprep.mubr.f32.mxu0 0.0
      %1128 = vmatmul.mubr.f32.gmra.mrb[0].mxu0 %v838
      %v1129 = vpop.f32.mrb[0].mxu0
      %v1130 = vadd.f32 %v985, %v1129
      %v1131 = vpop.f32.mrb[0].mxu0
      %1132 = vmatprep.mubr.f32.mxu0 0.0
      %1133 = vmatmul.mubr.f32.gmra.mrb[0].mxu0 %v839
      %v1134 = vpop.f32.mrb[0].mxu0
      %v1135 = vadd.f32 %v990, %v1134
      %v1136 = vpop.f32.mrb[0].mxu0
      %1137 = vmatprep.mubr.f32.mxu0 0.0
      %1138 = vmatmul.mubr.f32.gmra.mrb[0].mxu0 %v840
      %v1139 = vpop.f32.mrb[0].mxu0
      %v1140 = vadd.f32 %v995, %v1139
      %v1141 = vpop.f32.mrb[0].mxu0
      %1142 = vmatprep.mubr.f32.mxu0 0.0
      %1143 = vmatmul.mubr.f32.gmra.mrb[0].mxu0 %v841
      %v1144 = vpop.f32.mrb[0].mxu0
      %v1145 = vadd.f32 %v1000, %v1144
      %v1146 = vpop.f32.mrb[0].mxu0
      %1147 = vmatprep.mubr.f32.mxu0 0.0
      %1148 = vmatmul.mubr.f32.gmra.mrb[0].mxu0 %v842
      %v1149 = vpop.f32.mrb[0].mxu0
      %v1150 = vadd.f32 %v1005, %v1149
      %v1151 = vpop.f32.mrb[0].mxu0
      %1152 = vmatprep.mubr.f32.mxu0 0.0
      %1153 = vmatmul.mubr.f32.gmra.mrb[0].mxu0 %v843
      %v1154 = vpop.f32.mrb[0].mxu0
      %v1155 = vadd.f32 %v1010, %v1154
      %v1156 = vpop.f32.mrb[0].mxu0
      %1157 = vmatprep.mubr.f32.mxu0 0.0
      %1158 = vmatmul.mubr.f32.gmra.mrb[0].mxu0 %v844
      %v1159 = vpop.f32.mrb[0].mxu0
      %v1160 = vadd.f32 %v1015, %v1159
      %v1161 = vpop.f32.mrb[0].mxu0
      %1162 = vmatprep.mubr.f32.mxu0 0.0
      %1163 = vmatmul.mubr.f32.gmra.mrb[0].mxu0 %v845
      %v1164 = vpop.f32.mrb[0].mxu0
      %v1165 = vadd.f32 %v1020, %v1164
      %v1166 = vpop.f32.mrb[0].mxu0
      %1167 = vdwg.mxu0
      %v1168 = vld [vmem:[#allocation12 + $0x100] sm:$0xff]
      %v1169 = vld [vmem:[#allocation12 + $0x108] sm:$0xff]
      %v1170 = vld [vmem:[#allocation12 + $0x110] sm:$0xff]
      %v1171 = vld [vmem:[#allocation12 + $0x118] sm:$0xff]
      %v1172 = vld [vmem:[#allocation12 + $0x120] sm:$0xff]
      %v1173 = vld [vmem:[#allocation12 + $0x128] sm:$0xff]
      %v1174 = vld [vmem:[#allocation12 + $0x130] sm:$0xff]
      %v1175 = vld [vmem:[#allocation12 + $0x138] sm:$0xff]
      %v1176 = vld [vmem:[#allocation12 + $0x140] sm:$0xff]
      %v1177 = vld [vmem:[#allocation12 + $0x148] sm:$0xff]
      %v1178 = vld [vmem:[#allocation12 + $0x150] sm:$0xff]
      %v1179 = vld [vmem:[#allocation12 + $0x158] sm:$0xff]
      %v1180 = vld [vmem:[#allocation12 + $0x160] sm:$0xff]
      %v1181 = vld [vmem:[#allocation12 + $0x168] sm:$0xff]
      %v1182 = vld [vmem:[#allocation12 + $0x170] sm:$0xff]
      %v1183 = vld [vmem:[#allocation12 + $0x178] sm:$0xff]
      %1184 = vmatprep.subr.mxu0 0.0
      %1185 = vmatpush1.msra.mxu0 %v1168
      %1186 = vmatprep.subr.mxu0 0.0
      %1187 = vmatpush1.msra.mxu0 %v1169
      %1188 = vmatprep.subr.mxu0 0.0
      %1189 = vmatpush1.msra.mxu0 %v1170
      %1190 = vmatprep.subr.mxu0 0.0
      %1191 = vmatpush1.msra.mxu0 %v1171
      %1192 = vmatprep.subr.mxu0 0.0
      %1193 = vmatpush1.msra.mxu0 %v1172
      %1194 = vmatprep.subr.mxu0 0.0
      %1195 = vmatpush1.msra.mxu0 %v1173
      %1196 = vmatprep.subr.mxu0 0.0
      %1197 = vmatpush1.msra.mxu0 %v1174
      %1198 = vmatprep.subr.mxu0 0.0
      %1199 = vmatpush1.msra.mxu0 %v1175
      %1200 = vmatprep.subr.mxu0 0.0
      %1201 = vmatpush1.msra.mxu0 %v1176
      %1202 = vmatprep.subr.mxu0 0.0
      %1203 = vmatpush1.msra.mxu0 %v1177
      %1204 = vmatprep.subr.mxu0 0.0
      %1205 = vmatpush1.msra.mxu0 %v1178
      %1206 = vmatprep.subr.mxu0 0.0
      %1207 = vmatpush1.msra.mxu0 %v1179
      %1208 = vmatprep.subr.mxu0 0.0
      %1209 = vmatpush1.msra.mxu0 %v1180
      %1210 = vmatprep.subr.mxu0 0.0
      %1211 = vmatpush1.msra.mxu0 %v1181
      %1212 = vmatprep.subr.mxu0 0.0
      %1213 = vmatpush1.msra.mxu0 %v1182
      %1214 = vmatprep.subr.mxu0 0.0
      %1215 = vmatpush1.msra.mxu0 %v1183
      %1216 = vmatprep.subr.mxu0 0.0
      %1217 = vmatpush1.msra.mxu0 0.0
      %1218 = vmatprep.subr.mxu0 0.0
      %1219 = vmatpush1.msra.mxu0 0.0
      %1220 = vmatprep.subr.mxu0 0.0
      %1221 = vmatpush1.msra.mxu0 0.0
      %1222 = vmatprep.subr.mxu0 0.0
      %1223 = vmatpush1.msra.mxu0 0.0
      %1224 = vmatprep.subr.mxu0 0.0
      %1225 = vmatpush1.msra.mxu0 0.0
      %1226 = vmatprep.subr.mxu0 0.0
      %1227 = vmatpush1.msra.mxu0 0.0
      %1228 = vmatprep.subr.mxu0 0.0
      %1229 = vmatpush1.msra.mxu0 0.0
      %1230 = vmatprep.subr.mxu0 0.0
      %1231 = vmatpush1.msra.mxu0 0.0
      %1232 = vmatprep.subr.mxu0 0.0
      %1233 = vmatpush1.msra.mxu0 0.0
      %1234 = vmatprep.subr.mxu0 0.0
      %1235 = vmatpush1.msra.mxu0 0.0
      %1236 = vmatprep.subr.mxu0 0.0
      %1237 = vmatpush1.msra.mxu0 0.0
      %1238 = vmatprep.subr.mxu0 0.0
      %1239 = vmatpush1.msra.mxu0 0.0
      %1240 = vmatprep.subr.mxu0 0.0
      %1241 = vmatpush1.msra.mxu0 0.0
      %1242 = vmatprep.subr.mxu0 0.0
      %1243 = vmatpush1.msra.mxu0 0.0
      %1244 = vmatprep.subr.mxu0 0.0
      %1245 = vmatpush1.msra.mxu0 0.0
      %1246 = vmatprep.subr.mxu0 0.0
      %1247 = vmatpush1.msra.mxu0 0.0
      %1248 = vmatprep.mubr.f32.mxu0 0.0
      %1249 = vmatmul.mubr.f32.gmra.mrb[0].mxu0 %v814
      %v1250 = vpop.f32.mrb[0].mxu0
      %v1251 = vadd.f32 0.0, %v1250
      %v1252 = vpop.f32.mrb[0].mxu0
      %1253 = vmatprep.mubr.f32.mxu0 0.0
      %1254 = vmatmul.mubr.f32.gmra.mrb[0].mxu0 %v815
      %v1255 = vpop.f32.mrb[0].mxu0
      %v1256 = vadd.f32 0.0, %v1255
      %v1257 = vpop.f32.mrb[0].mxu0
      %1258 = vmatprep.mubr.f32.mxu0 0.0
      %1259 = vmatmul.mubr.f32.gmra.mrb[0].mxu0 %v816
      %v1260 = vpop.f32.mrb[0].mxu0
      %v1261 = vadd.f32 0.0, %v1260
      %v1262 = vpop.f32.mrb[0].mxu0
      %1263 = vmatprep.mubr.f32.mxu0 0.0
      %1264 = vmatmul.mubr.f32.gmra.mrb[0].mxu0 %v817
      %v1265 = vpop.f32.mrb[0].mxu0
      %v1266 = vadd.f32 0.0, %v1265
      %v1267 = vpop.f32.mrb[0].mxu0
      %1268 = vmatprep.mubr.f32.mxu0 0.0
      %1269 = vmatmul.mubr.f32.gmra.mrb[0].mxu0 %v818
      %v1270 = vpop.f32.mrb[0].mxu0
      %v1271 = vadd.f32 0.0, %v1270
      %v1272 = vpop.f32.mrb[0].mxu0
      %1273 = vmatprep.mubr.f32.mxu0 0.0
      %1274 = vmatmul.mubr.f32.gmra.mrb[0].mxu0 %v819
      %v1275 = vpop.f32.mrb[0].mxu0
      %v1276 = vadd.f32 0.0, %v1275
      %v1277 = vpop.f32.mrb[0].mxu0
      %1278 = vmatprep.mubr.f32.mxu0 0.0
      %1279 = vmatmul.mubr.f32.gmra.mrb[0].mxu0 %v820
      %v1280 = vpop.f32.mrb[0].mxu0
      %v1281 = vadd.f32 0.0, %v1280
      %v1282 = vpop.f32.mrb[0].mxu0
      %1283 = vmatprep.mubr.f32.mxu0 0.0
      %1284 = vmatmul.mubr.f32.gmra.mrb[0].mxu0 %v821
      %v1285 = vpop.f32.mrb[0].mxu0
      %v1286 = vadd.f32 0.0, %v1285
      %v1287 = vpop.f32.mrb[0].mxu0
      %1288 = vmatprep.mubr.f32.mxu0 0.0
      %1289 = vmatmul.mubr.f32.gmra.mrb[0].mxu0 %v822
      %v1290 = vpop.f32.mrb[0].mxu0
      %v1291 = vadd.f32 0.0, %v1290
      %v1292 = vpop.f32.mrb[0].mxu0
      %1293 = vmatprep.mubr.f32.mxu0 0.0
      %1294 = vmatmul.mubr.f32.gmra.mrb[0].mxu0 %v823
      %v1295 = vpop.f32.mrb[0].mxu0
      %v1296 = vadd.f32 0.0, %v1295
      %v1297 = vpop.f32.mrb[0].mxu0
      %1298 = vmatprep.mubr.f32.mxu0 0.0
      %1299 = vmatmul.mubr.f32.gmra.mrb[0].mxu0 %v824
      %v1300 = vpop.f32.mrb[0].mxu0
      %v1301 = vadd.f32 0.0, %v1300
      %v1302 = vpop.f32.mrb[0].mxu0
      %1303 = vmatprep.mubr.f32.mxu0 0.0
      %1304 = vmatmul.mubr.f32.gmra.mrb[0].mxu0 %v825
      %v1305 = vpop.f32.mrb[0].mxu0
      %v1306 = vadd.f32 0.0, %v1305
      %v1307 = vpop.f32.mrb[0].mxu0
      %1308 = vmatprep.mubr.f32.mxu0 0.0
      %1309 = vmatmul.mubr.f32.gmra.mrb[0].mxu0 %v826
      %v1310 = vpop.f32.mrb[0].mxu0
      %v1311 = vadd.f32 0.0, %v1310
      %v1312 = vpop.f32.mrb[0].mxu0
      %1313 = vmatprep.mubr.f32.mxu0 0.0
      %1314 = vmatmul.mubr.f32.gmra.mrb[0].mxu0 %v827
      %v1315 = vpop.f32.mrb[0].mxu0
      %v1316 = vadd.f32 0.0, %v1315
      %v1317 = vpop.f32.mrb[0].mxu0
      %1318 = vmatprep.mubr.f32.mxu0 0.0
      %1319 = vmatmul.mubr.f32.gmra.mrb[0].mxu0 %v828
      %v1320 = vpop.f32.mrb[0].mxu0
      %v1321 = vadd.f32 0.0, %v1320
      %v1322 = vpop.f32.mrb[0].mxu0
      %1323 = vmatprep.mubr.f32.mxu0 0.0
      %1324 = vmatmul.mubr.f32.gmra.mrb[0].mxu0 %v829
      %v1325 = vpop.f32.mrb[0].mxu0
      %v1326 = vadd.f32 0.0, %v1325
      %v1327 = vpop.f32.mrb[0].mxu0
      %1328 = vdwg.mxu0
      %v1329 = vadd.f32 %v1090, %v1251
      %v1330 = vadd.f32 %v1095, %v1256
      %v1331 = vadd.f32 %v1100, %v1261
      %v1332 = vadd.f32 %v1105, %v1266
      %v1333 = vadd.f32 %v1110, %v1271
      %v1334 = vadd.f32 %v1115, %v1276
      %v1335 = vadd.f32 %v1120, %v1281
      %v1336 = vadd.f32 %v1125, %v1286
      %v1337 = vadd.f32 %v1130, %v1291
      %v1338 = vadd.f32 %v1135, %v1296
      %v1339 = vadd.f32 %v1140, %v1301
      %v1340 = vadd.f32 %v1145, %v1306
      %v1341 = vadd.f32 %v1150, %v1311
      %v1342 = vadd.f32 %v1155, %v1316
      %v1343 = vadd.f32 %v1160, %v1321
      %v1344 = vadd.f32 %v1165, %v1326
      %v1345 = vld [vmem:[%s5] sm:$0x1]
      %v1347 = vlaneseq
      %v1348 = vshrl.u32 %v1347, 7
      %v1349 = vsub.s32 0, %v1348
      %v1350 = vrot.slane %v1345, %v1349
      %v1352 = vadd.f32 %v1329, %v1350
      %v1353 = vadd.f32 %v1330, %v1350
      %v1354 = vadd.f32 %v1331, %v1350
      %v1355 = vadd.f32 %v1332, %v1350
      %v1356 = vadd.f32 %v1333, %v1350
      %v1357 = vadd.f32 %v1334, %v1350
      %v1358 = vadd.f32 %v1335, %v1350
      %v1359 = vadd.f32 %v1336, %v1350
      %v1360 = vadd.f32 %v1337, %v1350
      %v1361 = vadd.f32 %v1338, %v1350
      %v1362 = vadd.f32 %v1339, %v1350
      %v1363 = vadd.f32 %v1340, %v1350
      %v1364 = vadd.f32 %v1341, %v1350
      %v1365 = vadd.f32 %v1342, %v1350
      %v1366 = vadd.f32 %v1343, %v1350
      %v1367 = vadd.f32 %v1344, %v1350
      %1368 = vst [vmem:[#allocation13] sm:$0xff] %v1352
      %1369 = vst [vmem:[#allocation13 + $0x8] sm:$0xff] %v1353
      %1370 = vst [vmem:[#allocation13 + $0x10] sm:$0xff] %v1354
      %1371 = vst [vmem:[#allocation13 + $0x18] sm:$0xff] %v1355
      %1372 = vst [vmem:[#allocation13 + $0x20] sm:$0xff] %v1356
      %1373 = vst [vmem:[#allocation13 + $0x28] sm:$0xff] %v1357
      %1374 = vst [vmem:[#allocation13 + $0x30] sm:$0xff] %v1358
      %1375 = vst [vmem:[#allocation13 + $0x38] sm:$0xff] %v1359
      %1376 = vst [vmem:[#allocation13 + $0x40] sm:$0xff] %v1360
      %1377 = vst [vmem:[#allocation13 + $0x48] sm:$0xff] %v1361
      %1378 = vst [vmem:[#allocation13 + $0x50] sm:$0xff] %v1362
      %1379 = vst [vmem:[#allocation13 + $0x58] sm:$0xff] %v1363
      %1380 = vst [vmem:[#allocation13 + $0x60] sm:$0xff] %v1364
      %1381 = vst [vmem:[#allocation13 + $0x68] sm:$0xff] %v1365
      %1382 = vst [vmem:[#allocation13 + $0x70] sm:$0xff] %v1366
      %1383 = vst [vmem:[#allocation13 + $0x78] sm:$0xff] %v1367
    $region53: #{tpu_custom_call.1} parent=1 // pred_fallthru
      _
    // Predicated region
    $region54: #{tpu_custom_call.1} parent=1 // pred_check
      _
    $region55: #{tpu_custom_call.1} parent=1 // pred_check_branch
      %1385 = sbr.rel (0) target = $region57
    $region56: #{tpu_custom_call.1} parent=1 // pred_region
      %s1387 = ssub.s32 2048, 2048
      %1388 = vsyncadd [#allocation6], %s1387
      %s1389 = sshll.u32 [#allocation13], 4
      %s1390 = int_to_ptr.vmem [resolvable:$true] %s1389
      %1395 = dma.vmem_to_hbm [thread:$0]  %s1390, 2048, %s6, [#allocation6], 128, 128, 8
    $region57: #{tpu_custom_call.1} parent=1 // pred_fallthru
      _
    // Predicated region
    $region58: #{tpu_custom_call.1} parent=1 // pred_check
      _
    $region59: #{tpu_custom_call.1} parent=1 // pred_check_branch
      %1397 = sbr.rel (0) target = $region61
    $region60: #{tpu_custom_call.1} parent=1 // pred_region
      %1398 = dma.done [#allocation6], 2048
    $region61: #{tpu_custom_call.1} parent=1 // pred_fallthru
      _
    %1399 = vsyncpa [#allocation5], 1
    %1400 = vsyncpa [#allocation8], 1
    %1401 = vsyncpa [#allocation11], 1
    %1402 = vsyncpa [#allocation6], 1

</llo_original>
